<compile_context>
chip_gen: v7x
topology: tpu7x:2x2x1
jax: 0.10.0
libtpu: 0.0.40
codegen_flags: <defaults>
</compile_context>

<pallas_src>
import jax
import jax.numpy as jnp
import numpy as np
from jax.experimental import pallas as pl
from jax.experimental.pallas import tpu as pltpu


def _conv2x2_tanh_flat(x_flat, width, w_ref, b_ref):
    """Fused 2x2 VALID conv + bias + tanh on a row-flattened slab.

    x_flat : (R*width, Cin) bf16 -- a (R, width, Cin) slab flattened row-major.
    w_ref  : (2*Cin, 2*Cout)     -- [[w00, w01], [w10, w11]] (fused in wrapper).
    Returns ((R-1)*width, Cout) bf16.  Output columns past this layer's valid
    width hold *finite* garbage (every layer ends in tanh), and deeper layers
    never read garbage for their own valid output positions.
    """
    flat_len = x_flat.shape[0]
    cout = w_ref.shape[1] // 2
    out_len = flat_len - width

    # One MXU pass: LHS K = 2*Cin (row r | row r+1), RHS N = 2*Cout (dj=0|dj=1).
    lhs = jnp.concatenate([x_flat[:out_len], x_flat[width:]], axis=1)
    s = jnp.dot(lhs, w_ref[...], preferred_element_type=jnp.float32)
    s0 = s[:, :cout]                      # taps with dj == 0 at flat pos m
    s1 = s[:, cout:]                      # taps with dj == 1 at flat pos m

    # out[m] = s0[m] + s1[m + 1].  roll(shift=out_len-1) == roll(-1); the
    # wrapped-around row only lands in the garbage last column of the slab.
    s1_up = pltpu.roll(s1, shift=out_len - 1, axis=0)

    y = (s0 + s1_up + b_ref[...]).astype(jnp.bfloat16)
    return jnp.tanh(y)                    # bf16 tanh (EUP bf16 path v6e/v7x)


def _fused_model_kernel(x_ref, w1_ref, b1_ref, w2_ref, b2_ref, w3_ref, b3_ref,
                        w4_ref, b4_ref, o_ref):
    # x_ref: (1, Hpad, W, 128) whole (padded) NHWC image, bf16, resident across
    #        the hb axis.  o_ref: (1, Hblk, W, 2) bf16; columns >= W-3 and any
    #        padded rows are garbage and are sliced off in the wrapper.
    hblk = o_ref.shape[1]
    width = x_ref.shape[2]
    cin = x_ref.shape[3]
    hs = hblk + 3                                   # rows incl. 3-row halo
    i0 = pl.program_id(1) * hblk

    x = x_ref[0, pl.ds(i0, hs), :, :].reshape(hs * width, cin)
    y = _conv2x2_tanh_flat(x, width, w1_ref, b1_ref)    # ((hs-1)*W, 128)
    y = _conv2x2_tanh_flat(y, width, w2_ref, b2_ref)    # ((hs-2)*W, 128)
    y = _conv2x2_tanh_flat(y, width, w3_ref, b3_ref)    # (hblk*W, 128)

    # 1x1 conv (+tanh) epilogue; N=2 matmul kept on the MXU (tiny vs layers 1-3).
    z = jnp.dot(y, w4_ref[...], preferred_element_type=jnp.float32) + b4_ref[...]
    o_ref[0] = jnp.tanh(z).astype(o_ref.dtype).reshape(hblk, width, 2)


def _fuse_2x2_weight(w):
    """HWIO (2, 2, Cin, Cout) -> (2*Cin, 2*Cout) laid out [[w00, w01], [w10, w11]]."""
    top = jnp.concatenate([w[0, 0], w[0, 1]], axis=1)   # row r taps
    bot = jnp.concatenate([w[1, 0], w[1, 1]], axis=1)   # row r+1 taps
    return jnp.concatenate([top, bot], axis=0)


def _vmem_budget():
    """(tiling byte budget, scoped vmem limit) from the local TPU generation."""
    try:
        cap = pltpu.get_tpu_info().vmem_capacity_bytes
    except Exception:                    # conservative fallback (v7x-sized)
        cap = 64 * 1024 * 1024
    return int(cap * 0.60), int(cap * 0.85)


def _estimate_vmem(hblk, h_pad, width, cin):
    m = (hblk + 3) * width
    img = 2 * h_pad * width * cin * 2               # double-buffered bf16 image
    wgt = 2 * (3 * (2 * cin) * (2 * cin) * 2 + cin * 2 * 2 + 4 * cin * 4)
    inter = m * 3072                                # live f32/bf16 temporaries
    outb = 2 * hblk * width * 128 * 2               # lane-padded bf16 out tile
    return img + wgt + inter + outb


def _pick_tiling(ho, width, cin, budget):
    """Largest H-block whose working set fits the per-generation VMEM budget."""
    for hblk in range(ho, 0, -1):
        ho_pad = -(-ho // hblk) * hblk
        h_pad = ho_pad + 3
        if _estimate_vmem(hblk, h_pad, width, cin) <= budget:
            return hblk, ho_pad, h_pad
    return 1, ho, ho + 3


def model_tanh_forward(x_nchw, params):
    """Pallas forward pass. x_nchw: (N, 128, H, W) f32 -> (N, 2, H-3, W-3) f32."""
    (w1, b1), (w2, b2), (w3, b3), (w4, b4) = params
    n, cin, h, width = x_nchw.shape
    ho, wo = h - 3, width - 3
    assert cin == 128 and h >= 4 and width >= 4 and width % 8 == 0

    budget, vmem_limit = _vmem_budget()
    hblk, ho_pad, h_pad = _pick_tiling(ho, width, cin, budget)
    grid = (n, ho_pad // hblk)

    # NCHW f32 -> NHWC bf16 (one fused XLA transpose+convert pass); pad H only
    # if the padded output grid needs extra (garbage) rows.
    x = jnp.transpose(x_nchw, (0, 2, 3, 1)).astype(jnp.bfloat16)
    if h_pad > h:
        x = jnp.pad(x, ((0, 0), (0, h_pad - h), (0, 0), (0, 0)))

    w1f, w2f, w3f = (_fuse_2x2_weight(w).astype(jnp.bfloat16)
                     for w in (w1, w2, w3))
    w4f = w4.astype(jnp.bfloat16)
    b1r, b2r, b3r, b4r = (b.reshape(1, -1).astype(jnp.float32)
                          for b in (b1, b2, b3, b4))

    c2 = 2 * cin
    const2 = lambda ni, hb: (0, 0)
    flops = 2 * n * ho_pad * width * (3 * c2 * c2 + cin * 2)
    transcendentals = n * ho_pad * width * (3 * cin + 2)
    bytes_accessed = (x.size * 2 + 3 * c2 * c2 * 2 + cin * 2 * 2
                      + n * ho_pad * width * 2 * 2)

    out = pl.pallas_call(
        _fused_model_kernel,
        out_shape=jax.ShapeDtypeStruct((n, ho_pad, width, 2), jnp.bfloat16),
        grid=grid,
        in_specs=[
            pl.BlockSpec((1, h_pad, width, cin), lambda ni, hb: (ni, 0, 0, 0)),
            pl.BlockSpec((c2, c2), const2),       # w1 fused (resident)
            pl.BlockSpec((1, cin), const2),       # b1
            pl.BlockSpec((c2, c2), const2),       # w2 fused
            pl.BlockSpec((1, cin), const2),       # b2
            pl.BlockSpec((c2, c2), const2),       # w3 fused
            pl.BlockSpec((1, cin), const2),       # b3
            pl.BlockSpec((cin, 2), const2),       # w4 (1x1 conv)
            pl.BlockSpec((1, 2), const2),         # b4
        ],
        out_specs=pl.BlockSpec((1, hblk, width, 2),
                               lambda ni, hb: (ni, hb, 0, 0)),
        compiler_params=pltpu.CompilerParams(
            dimension_semantics=("parallel", "arbitrary"),
            vmem_limit_bytes=vmem_limit),
        cost_estimate=pl.CostEstimate(flops=flops,
                                      transcendentals=transcendentals,
                                      bytes_accessed=bytes_accessed),
    )(x, w1f, b1r, w2f, b2r, w3f, b3r, w4f, b4r)

    out = out[:, :ho, :wo, :].astype(jnp.float32)   # drop garbage rows/cols
    return jnp.transpose(out, (0, 3, 1, 2))         # NHWC -> NCHW (tiny array)


def reference_forward(x_nchw, params):
    """Pure-JAX reference (XLA convs, f32) for the correctness check."""
    (w1, b1), (w2, b2), (w3, b3), (w4, b4) = params
    y = jnp.transpose(x_nchw, (0, 2, 3, 1))
    for w, b in ((w1, b1), (w2, b2), (w3, b3)):
        y = jax.lax.conv_general_dilated(
            y, w, window_strides=(1, 1), padding="VALID",
            dimension_numbers=("NHWC", "HWIO", "NHWC"))
        y = jnp.tanh(y + b.reshape(1, 1, 1, -1))
    y = jax.lax.conv_general_dilated(
        y, w4.reshape(1, 1, *w4.shape), window_strides=(1, 1), padding="VALID",
        dimension_numbers=("NHWC", "HWIO", "NHWC"))
    y = jnp.tanh(y + b4.reshape(1, 1, 1, -1))
    return jnp.transpose(y, (0, 3, 1, 2))


def make_params(key):
    """Deterministic synthetic parameters (HWIO weights, f32 master copies)."""
    ks = jax.random.split(key, 8)
    w1 = jax.random.normal(ks[0], (2, 2, 128, 128), jnp.float32) * 0.05
    b1 = jax.random.normal(ks[1], (128,), jnp.float32) * 0.1
    w2 = jax.random.normal(ks[2], (2, 2, 128, 128), jnp.float32) * 0.05
    b2 = jax.random.normal(ks[3], (128,), jnp.float32) * 0.1
    w3 = jax.random.normal(ks[4], (2, 2, 128, 128), jnp.float32) * 0.05
    b3 = jax.random.normal(ks[5], (128,), jnp.float32) * 0.1
    w4 = jax.random.normal(ks[6], (128, 2), jnp.float32) * 0.05
    b4 = jax.random.normal(ks[7], (2,), jnp.float32) * 0.1
    return ((w1, b1), (w2, b2), (w3, b3), (w4, b4))


if __name__ == "__main__":
    key = jax.random.PRNGKey(0)
    kx, kp = jax.random.split(key)
    # Small shapes consistent with the module: channels are fixed at 128 by the
    # Conv2d layers; batch=2, spatial=16 (original spec is (10, 128, 128, 128)).
    x = jax.random.normal(kx, (2, 128, 16, 16), jnp.float32)   # NCHW
    params = make_params(kp)

    out = jax.block_until_ready(model_tanh_forward(x, params))
    assert out.shape == (2, 2, 13, 13), out.shape

    ref = jax.block_until_ready(reference_forward(x, params))
    # Tolerance covers bf16 weights/activations and bf16-input tanh
    # (f32 accumulation and bias add).
    np.testing.assert_allclose(np.asarray(out), np.asarray(ref),
                               atol=4e-2, rtol=4e-2)
    print("KERNEL_OK")
</pallas_src>

<mosaic_0001>
module attributes {stable_mosaic.version = 11 : i64} {
  func.func @_fused_model_kernel(%arg0: i32, %arg1: i32, %arg2: memref<1x16x16x128xbf16, #tpu.memory_space<vmem>>, %arg3: memref<256x256xbf16, #tpu.memory_space<vmem>>, %arg4: memref<1x128xf32, #tpu.memory_space<vmem>>, %arg5: memref<256x256xbf16, #tpu.memory_space<vmem>>, %arg6: memref<1x128xf32, #tpu.memory_space<vmem>>, %arg7: memref<256x256xbf16, #tpu.memory_space<vmem>>, %arg8: memref<1x128xf32, #tpu.memory_space<vmem>>, %arg9: memref<128x2xbf16, #tpu.memory_space<vmem>>, %arg10: memref<1x2xf32, #tpu.memory_space<vmem>>, %arg11: memref<1x13x16x2xbf16, #tpu.memory_space<vmem>>) attributes {dimension_semantics = [#tpu.dimension_semantics<parallel>, #tpu.dimension_semantics<arbitrary>], iteration_bounds = array<i64: 2, 1>, scalar_prefetch = 0 : i64, scratch_operands = 0 : i64, tpu.core_type = #tpu.core_type<tc>, window_params = [{transform_indices = @transform_0, window_bounds = array<i64: 1, 16, 16, 128>}, {pipeline_mode = #tpu.pipeline_mode<synchronous>, transform_indices = @transform_1, window_bounds = array<i64: 256, 256>}, {pipeline_mode = #tpu.pipeline_mode<synchronous>, transform_indices = @transform_2, window_bounds = array<i64: 1, 128>}, {pipeline_mode = #tpu.pipeline_mode<synchronous>, transform_indices = @transform_3, window_bounds = array<i64: 256, 256>}, {pipeline_mode = #tpu.pipeline_mode<synchronous>, transform_indices = @transform_4, window_bounds = array<i64: 1, 128>}, {pipeline_mode = #tpu.pipeline_mode<synchronous>, transform_indices = @transform_5, window_bounds = array<i64: 256, 256>}, {pipeline_mode = #tpu.pipeline_mode<synchronous>, transform_indices = @transform_6, window_bounds = array<i64: 1, 128>}, {pipeline_mode = #tpu.pipeline_mode<synchronous>, transform_indices = @transform_7, window_bounds = array<i64: 128, 2>}, {pipeline_mode = #tpu.pipeline_mode<synchronous>, transform_indices = @transform_8, window_bounds = array<i64: 1, 2>}, {transform_indices = @transform_9, window_bounds = array<i64: 1, 13, 16, 2>}]} {
    %c13_i32 = arith.constant 13 : i32
    %0 = arith.muli %arg1, %c13_i32 : i32
    %c0 = arith.constant 0 : index
    %1 = arith.index_cast %0 : i32 to index
    %c0_0 = arith.constant 0 : index
    %c0_1 = arith.constant 0 : index
    %2 = vector.load %arg2[%c0, %1, %c0_0, %c0_1] : memref<1x16x16x128xbf16, #tpu.memory_space<vmem>>, vector<1x16x16x128xbf16>
    %3 = vector.shape_cast %2 : vector<1x16x16x128xbf16> to vector<16x16x128xbf16>
    %4 = vector.shape_cast %3 : vector<16x16x128xbf16> to vector<256x128xbf16>
    %5 = vector.extract_strided_slice %4 {offsets = [0, 0], sizes = [240, 128], strides = [1, 1]} : vector<256x128xbf16> to vector<240x128xbf16>
    %6 = vector.extract_strided_slice %4 {offsets = [16, 0], sizes = [240, 128], strides = [1, 1]} : vector<256x128xbf16> to vector<240x128xbf16>
    %7 = tpu.concatenate %5, %6 in 1 : vector<240x128xbf16>, vector<240x128xbf16> -> vector<240x256xbf16>
    %c0_2 = arith.constant 0 : index
    %c0_3 = arith.constant 0 : index
    %8 = vector.load %arg3[%c0_2, %c0_3] : memref<256x256xbf16, #tpu.memory_space<vmem>>, vector<256x256xbf16>
    %cst = arith.constant dense<0.000000e+00> : vector<240x256xf32>
    %9 = tpu.matmul %7, %8, %cst {dimension_numbers = #tpu.dot_dimension_numbers<[1], [0], [0], [1], [0, 0, 1, 1], [], []>} : vector<240x256xbf16>, vector<256x256xbf16>, vector<240x256xf32> -> vector<240x256xf32>
    %10 = vector.extract_strided_slice %9 {offsets = [0, 0], sizes = [240, 128], strides = [1, 1]} : vector<240x256xf32> to vector<240x128xf32>
    %11 = vector.extract_strided_slice %9 {offsets = [0, 128], sizes = [240, 128], strides = [1, 1]} : vector<240x256xf32> to vector<240x128xf32>
    %c239_i32 = arith.constant 239 : i32
    %12 = tpu.dynamic_rotate %11 by %c239_i32 dim 0 : vector<240x128xf32>, i32 -> vector<240x128xf32>
    %13 = arith.addf %10, %12 : vector<240x128xf32>
    %c0_4 = arith.constant 0 : index
    %c0_5 = arith.constant 0 : index
    %14 = vector.load %arg4[%c0_4, %c0_5] : memref<1x128xf32, #tpu.memory_space<vmem>>, vector<1x128xf32>
    %15 = vector.broadcast %14 : vector<1x128xf32> to vector<240x128xf32>
    %16 = arith.addf %13, %15 : vector<240x128xf32>
    %17 = arith.truncf %16 : vector<240x128xf32> to vector<240x128xbf16>
    %18 = math.tanh %17 : vector<240x128xbf16>
    %19 = vector.extract_strided_slice %18 {offsets = [0, 0], sizes = [224, 128], strides = [1, 1]} : vector<240x128xbf16> to vector<224x128xbf16>
    %20 = vector.extract_strided_slice %18 {offsets = [16, 0], sizes = [224, 128], strides = [1, 1]} : vector<240x128xbf16> to vector<224x128xbf16>
    %21 = tpu.concatenate %19, %20 in 1 : vector<224x128xbf16>, vector<224x128xbf16> -> vector<224x256xbf16>
    %c0_6 = arith.constant 0 : index
    %c0_7 = arith.constant 0 : index
    %22 = vector.load %arg5[%c0_6, %c0_7] : memref<256x256xbf16, #tpu.memory_space<vmem>>, vector<256x256xbf16>
    %cst_8 = arith.constant dense<0.000000e+00> : vector<224x256xf32>
    %23 = tpu.matmul %21, %22, %cst_8 {dimension_numbers = #tpu.dot_dimension_numbers<[1], [0], [0], [1], [0, 0, 1, 1], [], []>} : vector<224x256xbf16>, vector<256x256xbf16>, vector<224x256xf32> -> vector<224x256xf32>
    %24 = vector.extract_strided_slice %23 {offsets = [0, 0], sizes = [224, 128], strides = [1, 1]} : vector<224x256xf32> to vector<224x128xf32>
    %25 = vector.extract_strided_slice %23 {offsets = [0, 128], sizes = [224, 128], strides = [1, 1]} : vector<224x256xf32> to vector<224x128xf32>
    %c223_i32 = arith.constant 223 : i32
    %26 = tpu.dynamic_rotate %25 by %c223_i32 dim 0 : vector<224x128xf32>, i32 -> vector<224x128xf32>
    %27 = arith.addf %24, %26 : vector<224x128xf32>
    %c0_9 = arith.constant 0 : index
    %c0_10 = arith.constant 0 : index
    %28 = vector.load %arg6[%c0_9, %c0_10] : memref<1x128xf32, #tpu.memory_space<vmem>>, vector<1x128xf32>
    %29 = vector.broadcast %28 : vector<1x128xf32> to vector<224x128xf32>
    %30 = arith.addf %27, %29 : vector<224x128xf32>
    %31 = arith.truncf %30 : vector<224x128xf32> to vector<224x128xbf16>
    %32 = math.tanh %31 : vector<224x128xbf16>
    %33 = vector.extract_strided_slice %32 {offsets = [0, 0], sizes = [208, 128], strides = [1, 1]} : vector<224x128xbf16> to vector<208x128xbf16>
    %34 = vector.extract_strided_slice %32 {offsets = [16, 0], sizes = [208, 128], strides = [1, 1]} : vector<224x128xbf16> to vector<208x128xbf16>
    %35 = tpu.concatenate %33, %34 in 1 : vector<208x128xbf16>, vector<208x128xbf16> -> vector<208x256xbf16>
    %c0_11 = arith.constant 0 : index
    %c0_12 = arith.constant 0 : index
    %36 = vector.load %arg7[%c0_11, %c0_12] : memref<256x256xbf16, #tpu.memory_space<vmem>>, vector<256x256xbf16>
    %cst_13 = arith.constant dense<0.000000e+00> : vector<208x256xf32>
    %37 = tpu.matmul %35, %36, %cst_13 {dimension_numbers = #tpu.dot_dimension_numbers<[1], [0], [0], [1], [0, 0, 1, 1], [], []>} : vector<208x256xbf16>, vector<256x256xbf16>, vector<208x256xf32> -> vector<208x256xf32>
    %38 = vector.extract_strided_slice %37 {offsets = [0, 0], sizes = [208, 128], strides = [1, 1]} : vector<208x256xf32> to vector<208x128xf32>
    %39 = vector.extract_strided_slice %37 {offsets = [0, 128], sizes = [208, 128], strides = [1, 1]} : vector<208x256xf32> to vector<208x128xf32>
    %c207_i32 = arith.constant 207 : i32
    %40 = tpu.dynamic_rotate %39 by %c207_i32 dim 0 : vector<208x128xf32>, i32 -> vector<208x128xf32>
    %41 = arith.addf %38, %40 : vector<208x128xf32>
    %c0_14 = arith.constant 0 : index
    %c0_15 = arith.constant 0 : index
    %42 = vector.load %arg8[%c0_14, %c0_15] : memref<1x128xf32, #tpu.memory_space<vmem>>, vector<1x128xf32>
    %43 = vector.broadcast %42 : vector<1x128xf32> to vector<208x128xf32>
    %44 = arith.addf %41, %43 : vector<208x128xf32>
    %45 = arith.truncf %44 : vector<208x128xf32> to vector<208x128xbf16>
    %46 = math.tanh %45 : vector<208x128xbf16>
    %c0_16 = arith.constant 0 : index
    %c0_17 = arith.constant 0 : index
    %47 = vector.load %arg9[%c0_16, %c0_17] : memref<128x2xbf16, #tpu.memory_space<vmem>>, vector<128x2xbf16>
    %cst_18 = arith.constant dense<0.000000e+00> : vector<208x2xf32>
    %48 = tpu.matmul %46, %47, %cst_18 {dimension_numbers = #tpu.dot_dimension_numbers<[1], [0], [0], [1], [0, 0, 1, 1], [], []>} : vector<208x128xbf16>, vector<128x2xbf16>, vector<208x2xf32> -> vector<208x2xf32>
    %c0_19 = arith.constant 0 : index
    %c0_20 = arith.constant 0 : index
    %49 = vector.load %arg10[%c0_19, %c0_20] : memref<1x2xf32, #tpu.memory_space<vmem>>, vector<1x2xf32>
    %50 = vector.broadcast %49 : vector<1x2xf32> to vector<208x2xf32>
    %51 = arith.addf %48, %50 : vector<208x2xf32>
    %52 = math.tanh %51 : vector<208x2xf32>
    %53 = arith.truncf %52 : vector<208x2xf32> to vector<208x2xbf16>
    %54 = vector.shape_cast %53 : vector<208x2xbf16> to vector<13x16x2xbf16>
    %c0_21 = arith.constant 0 : index
    %c0_22 = arith.constant 0 : index
    %c0_23 = arith.constant 0 : index
    %c0_24 = arith.constant 0 : index
    %55 = vector.load %arg11[%c0_21, %c0_22, %c0_23, %c0_24] : memref<1x13x16x2xbf16, #tpu.memory_space<vmem>>, vector<1x13x16x2xbf16>
    %56 = vector.shape_cast %55 : vector<1x13x16x2xbf16> to vector<13x16x2xbf16>
    %57 = vector.shape_cast %54 : vector<13x16x2xbf16> to vector<1x13x16x2xbf16>
    tpu.vector_store %arg11[%c0_21, %c0_22, %c0_23, %c0_24], %57 {strides = array<i32>} : memref<1x13x16x2xbf16, #tpu.memory_space<vmem>>, vector<1x13x16x2xbf16>,
    return
  }
  func.func @transform_0(%arg0: i32, %arg1: i32) -> (i32, i32, i32, i32) {
    %c0_i32 = arith.constant 0 : i32
    %c0_i32_0 = arith.constant 0 : i32
    %c0_i32_1 = arith.constant 0 : i32
    %c0_i32_2 = arith.constant 0 : i32
    return %arg0, %c0_i32, %c0_i32_0, %c0_i32_1 : i32, i32, i32, i32
  }
  func.func @transform_1(%arg0: i32, %arg1: i32) -> (i32, i32) {
    %c0_i32 = arith.constant 0 : i32
    %c0_i32_0 = arith.constant 0 : i32
    %c0_i32_1 = arith.constant 0 : i32
    return %c0_i32, %c0_i32_0 : i32, i32
  }
  func.func @transform_2(%arg0: i32, %arg1: i32) -> (i32, i32) {
    %c0_i32 = arith.constant 0 : i32
    %c0_i32_0 = arith.constant 0 : i32
    %c0_i32_1 = arith.constant 0 : i32
    return %c0_i32, %c0_i32_0 : i32, i32
  }
  func.func @transform_3(%arg0: i32, %arg1: i32) -> (i32, i32) {
    %c0_i32 = arith.constant 0 : i32
    %c0_i32_0 = arith.constant 0 : i32
    %c0_i32_1 = arith.constant 0 : i32
    return %c0_i32, %c0_i32_0 : i32, i32
  }
  func.func @transform_4(%arg0: i32, %arg1: i32) -> (i32, i32) {
    %c0_i32 = arith.constant 0 : i32
    %c0_i32_0 = arith.constant 0 : i32
    %c0_i32_1 = arith.constant 0 : i32
    return %c0_i32, %c0_i32_0 : i32, i32
  }
  func.func @transform_5(%arg0: i32, %arg1: i32) -> (i32, i32) {
    %c0_i32 = arith.constant 0 : i32
    %c0_i32_0 = arith.constant 0 : i32
    %c0_i32_1 = arith.constant 0 : i32
    return %c0_i32, %c0_i32_0 : i32, i32
  }
  func.func @transform_6(%arg0: i32, %arg1: i32) -> (i32, i32) {
    %c0_i32 = arith.constant 0 : i32
    %c0_i32_0 = arith.constant 0 : i32
    %c0_i32_1 = arith.constant 0 : i32
    return %c0_i32, %c0_i32_0 : i32, i32
  }
  func.func @transform_7(%arg0: i32, %arg1: i32) -> (i32, i32) {
    %c0_i32 = arith.constant 0 : i32
    %c0_i32_0 = arith.constant 0 : i32
    %c0_i32_1 = arith.constant 0 : i32
    return %c0_i32, %c0_i32_0 : i32, i32
  }
  func.func @transform_8(%arg0: i32, %arg1: i32) -> (i32, i32) {
    %c0_i32 = arith.constant 0 : i32
    %c0_i32_0 = arith.constant 0 : i32
    %c0_i32_1 = arith.constant 0 : i32
    return %c0_i32, %c0_i32_0 : i32, i32
  }
  func.func @transform_9(%arg0: i32, %arg1: i32) -> (i32, i32, i32, i32) {
    %c0_i32 = arith.constant 0 : i32
    %c0_i32_0 = arith.constant 0 : i32
    %c0_i32_1 = arith.constant 0 : i32
    return %arg0, %arg1, %c0_i32, %c0_i32_0 : i32, i32, i32, i32
  }
}

</mosaic_0001>

<llo_original>
// kernel: tpu_custom_call.1
$region0: #{tpu_custom_call.1}
  #allocation0 [shape = 'u32[]', space=smem, size = 0x4, offset = 0x4, fixed_abs, tag = 'smem constant byte address 0x4 - core index']
  #allocation1 [shape = 'u32[144,128]{1,0:T(1,128)}', space=vmem, size = 0x12000, scoped, tag = 'internal scratch']
  %s0 = inlined_call_operand.hbm [shape: bf16[2,16,16,128], index: 0, kind: input, shape index: {}]
  %s1 = inlined_call_operand.hbm [shape: bf16[256,256], index: 1, kind: input, shape index: {}]
  %s2 = inlined_call_operand.vmem [shape: f32[1,128], index: 2, kind: input, shape index: {}]
  %s3 = inlined_call_operand.hbm [shape: bf16[256,256], index: 3, kind: input, shape index: {}]
  %s4 = inlined_call_operand.vmem [shape: f32[1,128], index: 4, kind: input, shape index: {}]
  %s5 = inlined_call_operand.hbm [shape: bf16[256,256], index: 5, kind: input, shape index: {}]
  %s6 = inlined_call_operand.vmem [shape: f32[1,128], index: 6, kind: input, shape index: {}]
  %s7 = inlined_call_operand.vmem [shape: bf16[128,2], index: 7, kind: input, shape index: {}]
  %s8 = inlined_call_operand.vmem [shape: f32[1,2], index: 8, kind: input, shape index: {}]
  %s9 = inlined_call_operand.vmem [shape: bf16[2,13,16,2], index: 9, kind: output, shape index: {}]
  %s10 = sld [smem:[#allocation0]]
  $region85: #{tpu_custom_call.1} parent=0
    _
  %s12 = ssub.s32 1, %s10
  %s13 = scalar_select 0, %s12, %s10
  $region1: #{tpu_custom_call.1} parent=0
    #allocation2 [shape = 'u8[131072]{0}', space=vmem, size = 0x20000, scoped, tag = 'input window, operand 0']
    #allocation3 [shape = 's32[2]{0}', space=sflag, size = 0x8, scoped, tag = 'scoped memory for tpu_custom_call.1']
    #allocation4 [shape = 'u8[131072]{0}', space=vmem, size = 0x20000, scoped, tag = 'input window, operand 1, single buffered']
    #allocation5 [shape = 's32[1]{0}', space=sflag, size = 0x4, scoped, tag = 'scoped memory for tpu_custom_call.1']
    #allocation6 [shape = 'u8[131072]{0}', space=vmem, size = 0x20000, scoped, tag = 'input window, operand 3, single buffered']
    #allocation7 [shape = 'u8[131072]{0}', space=vmem, size = 0x20000, scoped, tag = 'input window, operand 5, single buffered']
    #allocation8 [shape = 's32[1]{0}', space=sflag, size = 0x4, scoped, tag = 'scoped memory for tpu_custom_call.1']
    %14 = vsyncpa [#allocation3], 0
    %s15 = scalar_lea.sflag [#allocation3], 1
    %16 = vsyncpa %s15, 0
    %17 = vsyncpa [#allocation5], 0
    %18 = vsyncpa [#allocation8], 0
    loop: start=0, step=1, limit=4
    $region2: #{tpu_custom_call.1} parent=1 // loop_pre_header
      _
    $region3: #{tpu_custom_call.1} parent=1 // loop_header
      %s20 = sphi 0, %s24
      %p21 = scmp.ge.s32.totalorder %s20, 4
      %s27 = sphi 0, %s39
      %s28 = sphi 0, %s35
      %s29 = sphi 0, %s27
      %s30 = sphi 0, %s28
      %s31 = sphi 0, %s29
      %s32 = sphi 0, %s30
      %s42 = sphi 0, %s44
      %s45 = sphi 0, %s42
      %s46 = sphi 0, %s45
      %s62 = sphi 0, %s46
      %s66 = sphi 0, %s66
      %s68 = sphi 0, %s66
      %s69 = sphi 0, %s68
      %s83 = sphi 0, %s69
      %s87 = sphi 0, %s87
      %s89 = sphi 0, %s87
      %s90 = sphi 0, %s89
      %s104 = sphi 0, %s90
      %s108 = sphi 0, %s108
      %s110 = sphi 0, %s108
      %s111 = sphi 0, %s110
      %s125 = sphi 0, %s111
      %s129 = sphi 0, %s129
      %s131 = sphi 0, %s129
      %s132 = sphi 0, %s131
      %s146 = sphi 0, %s132
      %s150 = sphi 0, %s150
      %s152 = sphi 0, %s150
      %s153 = sphi 0, %s152
      %s167 = sphi 0, %s153
      %s171 = sphi 0, %s171
      %s173 = sphi 0, %s171
      %s174 = sphi 0, %s173
      %s188 = sphi 0, %s174
      %s192 = sphi 0, %s192
      %s194 = sphi 0, %s192
      %s195 = sphi 0, %s194
      %s209 = sphi 0, %s195
      %s213 = sphi 0, %s213
      %s215 = sphi 0, %s213
      %s216 = sphi 0, %s215
      %s230 = sphi 0, %s216
      %s238 = sphi 0, %s240
      %s241 = sphi 0, %s238
      %s242 = sphi 0, %s241
      %s258 = sphi 0, %s242
    $region4: #{tpu_custom_call.1} parent=1 // loop_header_branch
      %23 = sbr.rel (%p21) target = $region8
    $region5: #{tpu_custom_call.1} parent=1 // loop_body
      %s25 = ssub.s32 %s20, 1
      %s26 = ssub.s32 %s20, 2
      %s33 = sadd.s32 1, %s28
      %p34 = scmp.ge.s32.totalorder %s33, 1
      %s35 = scalar_select %p34, 0, %s33
      %s36 = sadd.s32 1, %s27
      %s37 = scalar_select %p34, %s36, %s27
      %p38 = scmp.ge.s32.totalorder %s37, 2
      %s39 = scalar_select %p38, 0, %s37
      %s40 = ssub.s32 %s27, %s39
      %p41 = scmp.eq.s32.totalorder %s40, 0
      %s43 = sadd.s32 %s42, 1
      %s44 = scalar_select %p41, %s42, %s43
      %p47 = pneg %p41
      %p48 = scmp.eq.s32.totalorder %s20, 1
      %p49 = por %p47, %p48
      %p50 = scmp.ne.s32.totalorder %s42, %s45
      %p51 = scmp.eq.s32.totalorder %s20, 0
      %p52 = por %p50, %p51
      %p53 = scmp.ne.s32.totalorder %s42, %s45
      %p54 = scmp.eq.s32.totalorder %s25, 1
      %p55 = por %p53, %p54
      %p56 = scmp.ne.s32.totalorder %s45, %s46
      %p57 = scmp.eq.s32.totalorder %s25, 0
      %p58 = por %p56, %p57
      %p59 = scmp.ne.s32.totalorder %s45, %s46
      %p60 = scmp.eq.s32.totalorder %s26, 1
      %p61 = por %p59, %p60
      %p63 = scmp.ne.s32.totalorder %s46, %s62
      %p64 = scmp.eq.s32.totalorder %s26, 0
      %p65 = por %p63, %p64
      %s67 = sadd.s32 %s66, 1
      %p70 = scmp.eq.s32.totalorder %s20, 1
      %p71 = scmp.ne.s32.totalorder %s66, %s68
      %p72 = scmp.eq.s32.totalorder %s20, 0
      %p73 = por %p71, %p72
      %p74 = scmp.ne.s32.totalorder %s66, %s68
      %p75 = scmp.eq.s32.totalorder %s25, 1
      %p76 = por %p74, %p75
      %p77 = scmp.ne.s32.totalorder %s68, %s69
      %p78 = scmp.eq.s32.totalorder %s25, 0
      %p79 = por %p77, %p78
      %p80 = scmp.ne.s32.totalorder %s68, %s69
      %p81 = scmp.eq.s32.totalorder %s26, 1
      %p82 = por %p80, %p81
      %p84 = scmp.ne.s32.totalorder %s69, %s83
      %p85 = scmp.eq.s32.totalorder %s26, 0
      %p86 = por %p84, %p85
      %s88 = sadd.s32 %s87, 1
      %p91 = scmp.eq.s32.totalorder %s20, 1
      %p92 = scmp.ne.s32.totalorder %s87, %s89
      %p93 = scmp.eq.s32.totalorder %s20, 0
      %p94 = por %p92, %p93
      %p95 = scmp.ne.s32.totalorder %s87, %s89
      %p96 = scmp.eq.s32.totalorder %s25, 1
      %p97 = por %p95, %p96
      %p98 = scmp.ne.s32.totalorder %s89, %s90
      %p99 = scmp.eq.s32.totalorder %s25, 0
      %p100 = por %p98, %p99
      %p101 = scmp.ne.s32.totalorder %s89, %s90
      %p102 = scmp.eq.s32.totalorder %s26, 1
      %p103 = por %p101, %p102
      %p105 = scmp.ne.s32.totalorder %s90, %s104
      %p106 = scmp.eq.s32.totalorder %s26, 0
      %p107 = por %p105, %p106
      %s109 = sadd.s32 %s108, 1
      %p112 = scmp.eq.s32.totalorder %s20, 1
      %p113 = scmp.ne.s32.totalorder %s108, %s110
      %p114 = scmp.eq.s32.totalorder %s20, 0
      %p115 = por %p113, %p114
      %p116 = scmp.ne.s32.totalorder %s108, %s110
      %p117 = scmp.eq.s32.totalorder %s25, 1
      %p118 = por %p116, %p117
      %p119 = scmp.ne.s32.totalorder %s110, %s111
      %p120 = scmp.eq.s32.totalorder %s25, 0
      %p121 = por %p119, %p120
      %p122 = scmp.ne.s32.totalorder %s110, %s111
      %p123 = scmp.eq.s32.totalorder %s26, 1
      %p124 = por %p122, %p123
      %p126 = scmp.ne.s32.totalorder %s111, %s125
      %p127 = scmp.eq.s32.totalorder %s26, 0
      %p128 = por %p126, %p127
      %s130 = sadd.s32 %s129, 1
      %p133 = scmp.eq.s32.totalorder %s20, 1
      %p134 = scmp.ne.s32.totalorder %s129, %s131
      %p135 = scmp.eq.s32.totalorder %s20, 0
      %p136 = por %p134, %p135
      %p137 = scmp.ne.s32.totalorder %s129, %s131
      %p138 = scmp.eq.s32.totalorder %s25, 1
      %p139 = por %p137, %p138
      %p140 = scmp.ne.s32.totalorder %s131, %s132
      %p141 = scmp.eq.s32.totalorder %s25, 0
      %p142 = por %p140, %p141
      %p143 = scmp.ne.s32.totalorder %s131, %s132
      %p144 = scmp.eq.s32.totalorder %s26, 1
      %p145 = por %p143, %p144
      %p147 = scmp.ne.s32.totalorder %s132, %s146
      %p148 = scmp.eq.s32.totalorder %s26, 0
      %p149 = por %p147, %p148
      %s151 = sadd.s32 %s150, 1
      %p154 = scmp.eq.s32.totalorder %s20, 1
      %p155 = scmp.ne.s32.totalorder %s150, %s152
      %p156 = scmp.eq.s32.totalorder %s20, 0
      %p157 = por %p155, %p156
      %p158 = scmp.ne.s32.totalorder %s150, %s152
      %p159 = scmp.eq.s32.totalorder %s25, 1
      %p160 = por %p158, %p159
      %p161 = scmp.ne.s32.totalorder %s152, %s153
      %p162 = scmp.eq.s32.totalorder %s25, 0
      %p163 = por %p161, %p162
      %p164 = scmp.ne.s32.totalorder %s152, %s153
      %p165 = scmp.eq.s32.totalorder %s26, 1
      %p166 = por %p164, %p165
      %p168 = scmp.ne.s32.totalorder %s153, %s167
      %p169 = scmp.eq.s32.totalorder %s26, 0
      %p170 = por %p168, %p169
      %s172 = sadd.s32 %s171, 1
      %p175 = scmp.eq.s32.totalorder %s20, 1
      %p176 = scmp.ne.s32.totalorder %s171, %s173
      %p177 = scmp.eq.s32.totalorder %s20, 0
      %p178 = por %p176, %p177
      %p179 = scmp.ne.s32.totalorder %s171, %s173
      %p180 = scmp.eq.s32.totalorder %s25, 1
      %p181 = por %p179, %p180
      %p182 = scmp.ne.s32.totalorder %s173, %s174
      %p183 = scmp.eq.s32.totalorder %s25, 0
      %p184 = por %p182, %p183
      %p185 = scmp.ne.s32.totalorder %s173, %s174
      %p186 = scmp.eq.s32.totalorder %s26, 1
      %p187 = por %p185, %p186
      %p189 = scmp.ne.s32.totalorder %s174, %s188
      %p190 = scmp.eq.s32.totalorder %s26, 0
      %p191 = por %p189, %p190
      %s193 = sadd.s32 %s192, 1
      %p196 = scmp.eq.s32.totalorder %s20, 1
      %p197 = scmp.ne.s32.totalorder %s192, %s194
      %p198 = scmp.eq.s32.totalorder %s20, 0
      %p199 = por %p197, %p198
      %p200 = scmp.ne.s32.totalorder %s192, %s194
      %p201 = scmp.eq.s32.totalorder %s25, 1
      %p202 = por %p200, %p201
      %p203 = scmp.ne.s32.totalorder %s194, %s195
      %p204 = scmp.eq.s32.totalorder %s25, 0
      %p205 = por %p203, %p204
      %p206 = scmp.ne.s32.totalorder %s194, %s195
      %p207 = scmp.eq.s32.totalorder %s26, 1
      %p208 = por %p206, %p207
      %p210 = scmp.ne.s32.totalorder %s195, %s209
      %p211 = scmp.eq.s32.totalorder %s26, 0
      %p212 = por %p210, %p211
      %s214 = sadd.s32 %s213, 1
      %p217 = scmp.eq.s32.totalorder %s20, 1
      %p218 = scmp.ne.s32.totalorder %s213, %s215
      %p219 = scmp.eq.s32.totalorder %s20, 0
      %p220 = por %p218, %p219
      %p221 = scmp.ne.s32.totalorder %s213, %s215
      %p222 = scmp.eq.s32.totalorder %s25, 1
      %p223 = por %p221, %p222
      %p224 = scmp.ne.s32.totalorder %s215, %s216
      %p225 = scmp.eq.s32.totalorder %s25, 0
      %p226 = por %p224, %p225
      %p227 = scmp.ne.s32.totalorder %s215, %s216
      %p228 = scmp.eq.s32.totalorder %s26, 1
      %p229 = por %p227, %p228
      %p231 = scmp.ne.s32.totalorder %s216, %s230
      %p232 = scmp.eq.s32.totalorder %s26, 0
      %p233 = por %p231, %p232
      %s234 = ssub.s32 %s27, %s39
      %s235 = ssub.s32 %s28, %s35
      %s236 = sor.u32 %s234, %s235
      %p237 = scmp.eq.s32.totalorder %s236, 0
      %s239 = sadd.s32 %s238, 1
      %s240 = scalar_select %p237, %s238, %s239
      %p243 = pneg %p237
      %p244 = scmp.eq.s32.totalorder %s20, 1
      %p245 = por %p243, %p244
      %p246 = scmp.ne.s32.totalorder %s238, %s241
      %p247 = scmp.eq.s32.totalorder %s20, 0
      %p248 = por %p246, %p247
      %p249 = scmp.ne.s32.totalorder %s238, %s241
      %p250 = scmp.eq.s32.totalorder %s25, 1
      %p251 = por %p249, %p250
      %p252 = scmp.ne.s32.totalorder %s241, %s242
      %p253 = scmp.eq.s32.totalorder %s25, 0
      %p254 = por %p252, %p253
      %p255 = scmp.ne.s32.totalorder %s241, %s242
      %p256 = scmp.eq.s32.totalorder %s26, 1
      %p257 = por %p255, %p256
      %p259 = scmp.ne.s32.totalorder %s242, %s258
      %p260 = scmp.eq.s32.totalorder %s26, 0
      %p261 = por %p259, %p260
      %p262 = scmp.le.s32.totalorder 1, %s20
      %p263 = scmp.lt.s32.totalorder %s20, 3
      %p264 = pnand %p262, %p263
      %p265 = pneg %p264
      // Predicated region
      $region9: #{tpu_custom_call.1} parent=5 // pred_check
        _
      $region10: #{tpu_custom_call.1} parent=5 // pred_check_branch
        %267 = sbr.rel (%p264) target = $region12
      $region11: #{tpu_custom_call.1} parent=5 // pred_region
        %s268 = ssub.s32 %s20, 1
        // Predicated region
        $region13: #{tpu_custom_call.1} parent=11 // pred_check
          %p269 = pneg %p79
        $region14: #{tpu_custom_call.1} parent=11 // pred_check_branch
          %271 = sbr.rel (%p269) target = $region16
        $region15: #{tpu_custom_call.1} parent=11 // pred_region
          %s273 = ssub.s32 4096, 4096
          %274 = vsyncadd [#allocation5], %s273
          %s275 = sshll.u32 [#allocation4], 4
          %s276 = int_to_ptr.vmem [resolvable:$true] %s275
          %281 = dma.hbm_to_vmem [thread:$0]  %s1, 4096, %s276, [#allocation5], 128, 128, 8
        $region16: #{tpu_custom_call.1} parent=11 // pred_fallthru
          _
        // Predicated region
        $region17: #{tpu_custom_call.1} parent=11 // pred_check
          %p282 = pneg %p100
        $region18: #{tpu_custom_call.1} parent=11 // pred_check_branch
          %284 = sbr.rel (%p282) target = $region20
        $region19: #{tpu_custom_call.1} parent=11 // pred_region
          _
        $region20: #{tpu_custom_call.1} parent=11 // pred_fallthru
          _
        // Predicated region
        $region21: #{tpu_custom_call.1} parent=11 // pred_check
          %p285 = pneg %p121
        $region22: #{tpu_custom_call.1} parent=11 // pred_check_branch
          %287 = sbr.rel (%p285) target = $region24
        $region23: #{tpu_custom_call.1} parent=11 // pred_region
          %s289 = ssub.s32 4096, 4096
          %290 = vsyncadd [#allocation5], %s289
          %s291 = sshll.u32 [#allocation6], 4
          %s292 = int_to_ptr.vmem [resolvable:$true] %s291
          %297 = dma.hbm_to_vmem [thread:$0]  %s3, 4096, %s292, [#allocation5], 128, 128, 8
        $region24: #{tpu_custom_call.1} parent=11 // pred_fallthru
          _
        // Predicated region
        $region25: #{tpu_custom_call.1} parent=11 // pred_check
          %p298 = pneg %p142
        $region26: #{tpu_custom_call.1} parent=11 // pred_check_branch
          %300 = sbr.rel (%p298) target = $region28
        $region27: #{tpu_custom_call.1} parent=11 // pred_region
          _
        $region28: #{tpu_custom_call.1} parent=11 // pred_fallthru
          _
        // Predicated region
        $region29: #{tpu_custom_call.1} parent=11 // pred_check
          %p301 = pneg %p163
        $region30: #{tpu_custom_call.1} parent=11 // pred_check_branch
          %303 = sbr.rel (%p301) target = $region32
        $region31: #{tpu_custom_call.1} parent=11 // pred_region
          %s305 = ssub.s32 4096, 4096
          %306 = vsyncadd [#allocation8], %s305
          %s307 = sshll.u32 [#allocation7], 4
          %s308 = int_to_ptr.vmem [resolvable:$true] %s307
          %313 = dma.hbm_to_vmem [thread:$0]  %s5, 4096, %s308, [#allocation8], 128, 128, 8
        $region32: #{tpu_custom_call.1} parent=11 // pred_fallthru
          _
        // Predicated region
        $region33: #{tpu_custom_call.1} parent=11 // pred_check
          %p314 = pneg %p184
        $region34: #{tpu_custom_call.1} parent=11 // pred_check_branch
          %316 = sbr.rel (%p314) target = $region36
        $region35: #{tpu_custom_call.1} parent=11 // pred_region
          _
        $region36: #{tpu_custom_call.1} parent=11 // pred_fallthru
          _
        // Predicated region
        $region37: #{tpu_custom_call.1} parent=11 // pred_check
          %p317 = pneg %p205
        $region38: #{tpu_custom_call.1} parent=11 // pred_check_branch
          %319 = sbr.rel (%p317) target = $region40
        $region39: #{tpu_custom_call.1} parent=11 // pred_region
          _
        $region40: #{tpu_custom_call.1} parent=11 // pred_fallthru
          _
        // Predicated region
        $region41: #{tpu_custom_call.1} parent=11 // pred_check
          %p320 = pneg %p226
        $region42: #{tpu_custom_call.1} parent=11 // pred_check_branch
          %322 = sbr.rel (%p320) target = $region44
        $region43: #{tpu_custom_call.1} parent=11 // pred_region
          _
        $region44: #{tpu_custom_call.1} parent=11 // pred_fallthru
          _
      $region12: #{tpu_custom_call.1} parent=5 // pred_fallthru
        _
      %p323 = scmp.lt.s32.totalorder %s20, 2
      // Predicated region
      $region45: #{tpu_custom_call.1} parent=5 // pred_check
        %p324 = pneg %p323
      $region46: #{tpu_custom_call.1} parent=5 // pred_check_branch
        %326 = sbr.rel (%p324) target = $region48
      $region47: #{tpu_custom_call.1} parent=5 // pred_region
        // Predicated region
        $region49: #{tpu_custom_call.1} parent=47 // pred_check
          %p327 = pneg %p52
        $region50: #{tpu_custom_call.1} parent=47 // pred_check_branch
          %329 = sbr.rel (%p327) target = $region52
        $region51: #{tpu_custom_call.1} parent=47 // pred_region
          %s330 = sand.u32 %s42, 1
          %s331 = scalar_lea.sflag [#allocation3], %s330
          %s332 = sand.u32 %s42, 1
          %s333 = smul.addr %s332, 128
          %s334 = scalar_lea.vmem [#allocation2], %s333
          %s336 = ssub.s32 2048, 2048
          %337 = vsyncadd %s331, %s336
          %s338 = smul.addr %s27, 32
          %s339 = smul.addr %s338, 64
          %s340 = scalar_lea.hbm %s0, %s339
          %s341 = sshll.u32 %s334, 4
          %s342 = int_to_ptr.vmem [resolvable:$true] %s341
          %347 = dma.hbm_to_vmem [thread:$0]  %s340, 2048, %s342, %s331, 64, 64, 4
        $region52: #{tpu_custom_call.1} parent=47 // pred_fallthru
          _
      $region48: #{tpu_custom_call.1} parent=5 // pred_fallthru
        _
      %p348 = scmp.le.s32.totalorder 1, %s20
      %p349 = scmp.lt.s32.totalorder %s20, 3
      %p350 = pnand %p348, %p349
      %p351 = pneg %p350
      // Predicated region
      $region53: #{tpu_custom_call.1} parent=5 // pred_check
        _
      $region54: #{tpu_custom_call.1} parent=5 // pred_check_branch
        %353 = sbr.rel (%p350) target = $region56
      $region55: #{tpu_custom_call.1} parent=5 // pred_region
        %s354 = ssub.s32 %s20, 1
        %s355 = sand.u32 %s45, 1
        %s356 = scalar_lea.sflag [#allocation3], %s355
        %s357 = sand.u32 %s45, 1
        %s358 = smul.addr %s357, 128
        %s359 = scalar_lea.vmem [#allocation2], %s358
        // Predicated region
        $region57: #{tpu_custom_call.1} parent=55 // pred_check
          %p360 = pneg %p58
        $region58: #{tpu_custom_call.1} parent=55 // pred_check_branch
          %362 = sbr.rel (%p360) target = $region60
        $region59: #{tpu_custom_call.1} parent=55 // pred_region
          %363 = dma.done %s356, 2048
        $region60: #{tpu_custom_call.1} parent=55 // pred_fallthru
          _
        // Predicated region
        $region61: #{tpu_custom_call.1} parent=55 // pred_check
          %p364 = pneg %p79
        $region62: #{tpu_custom_call.1} parent=55 // pred_check_branch
          %366 = sbr.rel (%p364) target = $region64
        $region63: #{tpu_custom_call.1} parent=55 // pred_region
          %367 = dma.done [#allocation5], 4096
        $region64: #{tpu_custom_call.1} parent=55 // pred_fallthru
          _
        // Predicated region
        $region65: #{tpu_custom_call.1} parent=55 // pred_check
          %p368 = pneg %p121
        $region66: #{tpu_custom_call.1} parent=55 // pred_check_branch
          %370 = sbr.rel (%p368) target = $region68
        $region67: #{tpu_custom_call.1} parent=55 // pred_region
          %371 = dma.done [#allocation5], 4096
        $region68: #{tpu_custom_call.1} parent=55 // pred_fallthru
          _
        // Predicated region
        $region69: #{tpu_custom_call.1} parent=55 // pred_check
          %p372 = pneg %p163
        $region70: #{tpu_custom_call.1} parent=55 // pred_check_branch
          %374 = sbr.rel (%p372) target = $region72
        $region71: #{tpu_custom_call.1} parent=55 // pred_region
          %375 = dma.done [#allocation8], 4096
        $region72: #{tpu_custom_call.1} parent=55 // pred_fallthru
          _
        %s376 = sand.u32 %s45, 1
        %s377 = scalar_lea.sflag [#allocation3], %s376
        %s378 = sand.u32 %s45, 1
        %s379 = smul.addr %s378, 128
        %s380 = scalar_lea.vmem [#allocation2], %s379
        %p381 = pneg %p58
        %p382 = pneg %p55
        %p383 = pneg %p79
        %p384 = pneg %p76
        %p385 = pneg %p100
        %p386 = pneg %p97
        %p387 = pneg %p121
        %p388 = pneg %p118
        %p389 = pneg %p142
        %p390 = pneg %p139
        %p391 = pneg %p163
        %p392 = pneg %p160
        %p393 = pneg %p184
        %p394 = pneg %p181
        %p395 = pneg %p205
        %p396 = pneg %p202
        %p397 = pneg %p226
        %p398 = pneg %p223
        %p399 = pneg %p254
        %p400 = pneg %p251
        %s401 = smul.u32 13, %s30
        %p402 = scmp.lt.s32.totalorder %s29, 1
        %s403 = scalar_select %p402, %s29, 1
        %p404 = scmp.lt.s32.totalorder %s401, 12
        %s405 = scalar_select %p404, %s401, 12
        %s406 = smul.addr %s405, 2
        %s407 = smul.addr %s403, 26
        %s408 = sadd.s32 %s406, %s407
        %s409 = smul.addr %s408, 4
        %s410 = scalar_lea.vmem %s9, %s409
        %s411 = smul.u32 13, %s30
        %p412 = scmp.lt.s32.totalorder %s29, 1
        %s413 = scalar_select %p412, %s29, 1
        %p414 = scmp.lt.s32.totalorder %s411, 12
        %s415 = scalar_select %p414, %s411, 12
        %s416 = smul.addr %s415, 2
        %s417 = smul.addr %s413, 26
        %s418 = sadd.s32 %s416, %s417
        %s419 = smul.addr %s418, 4
        %s420 = scalar_lea.vmem %s9, %s419
        %s421 = smul.u32 13, %s30
        %s423 = smul.u32 %s30, 13
        %s424 = smul.u32 %s423, 2
        %s425 = smul.addr %s424, 4
        %s426 = scalar_lea.vmem %s359, %s425 [#allocation2]
        %v427 = vld [vmem:[%s426] sm:$0xf]
        %v428 = vld [vmem:[%s426 + $0x4] sm:$0xf]
        %v429 = vld [vmem:[%s426 + $0x8] sm:$0xf]
        %v430 = vld [vmem:[%s426 + $0xc] sm:$0xf]
        %v431 = vld [vmem:[%s426 + $0x10] sm:$0xf]
        %v432 = vld [vmem:[%s426 + $0x14] sm:$0xf]
        %v433 = vld [vmem:[%s426 + $0x18] sm:$0xf]
        %v434 = vld [vmem:[%s426 + $0x1c] sm:$0xf]
        %v435 = vld [vmem:[%s426 + $0x20] sm:$0xf]
        %v436 = vld [vmem:[%s426 + $0x24] sm:$0xf]
        %v437 = vld [vmem:[%s426 + $0x28] sm:$0xf]
        %v438 = vld [vmem:[%s426 + $0x2c] sm:$0xf]
        %v439 = vld [vmem:[%s426 + $0x30] sm:$0xf]
        %v440 = vld [vmem:[%s426 + $0x34] sm:$0xf]
        %v441 = vld [vmem:[%s426 + $0x38] sm:$0xf]
        %v442 = vld [vmem:[%s426 + $0x3c] sm:$0xf]
        %v443 = vld [vmem:[%s426 + $0x40] sm:$0xf]
        %v444 = vld [vmem:[%s426 + $0x44] sm:$0xf]
        %v445 = vld [vmem:[%s426 + $0x48] sm:$0xf]
        %v446 = vld [vmem:[%s426 + $0x4c] sm:$0xf]
        %v447 = vld [vmem:[%s426 + $0x50] sm:$0xf]
        %v448 = vld [vmem:[%s426 + $0x54] sm:$0xf]
        %v449 = vld [vmem:[%s426 + $0x58] sm:$0xf]
        %v450 = vld [vmem:[%s426 + $0x5c] sm:$0xf]
        %v451 = vld [vmem:[%s426 + $0x60] sm:$0xf]
        %v452 = vld [vmem:[%s426 + $0x64] sm:$0xf]
        %v453 = vld [vmem:[%s426 + $0x68] sm:$0xf]
        %v454 = vld [vmem:[%s426 + $0x6c] sm:$0xf]
        %v455 = vld [vmem:[%s426 + $0x70] sm:$0xf]
        %v456 = vld [vmem:[%s426 + $0x74] sm:$0xf]
        %v457 = vld [vmem:[%s426 + $0x78] sm:$0xf]
        %v458 = vld [vmem:[%s426 + $0x7c] sm:$0xf]
        %v489 = vunpack.c.l.b16 %v427
        %v490 = vunpack.c.l.b16 %v428
        %v491 = vunpack.c.l.b16 %v429
        %v492 = vunpack.c.l.b16 %v430
        %v493 = vunpack.c.l.b16 %v431
        %v494 = vunpack.c.l.b16 %v432
        %v495 = vunpack.c.l.b16 %v433
        %v496 = vunpack.c.l.b16 %v434
        %v497 = vunpack.c.l.b16 %v435
        %v498 = vunpack.c.l.b16 %v436
        %v499 = vunpack.c.l.b16 %v437
        %v500 = vunpack.c.l.b16 %v438
        %v501 = vunpack.c.l.b16 %v439
        %v502 = vunpack.c.l.b16 %v440
        %v503 = vunpack.c.l.b16 %v441
        %v504 = vunpack.c.l.b16 %v442
        %v505 = vunpack.c.l.b16 %v443
        %v506 = vunpack.c.l.b16 %v444
        %v507 = vunpack.c.l.b16 %v445
        %v508 = vunpack.c.l.b16 %v446
        %v509 = vunpack.c.l.b16 %v447
        %v510 = vunpack.c.l.b16 %v448
        %v511 = vunpack.c.l.b16 %v449
        %v512 = vunpack.c.l.b16 %v450
        %v513 = vunpack.c.l.b16 %v451
        %v514 = vunpack.c.l.b16 %v452
        %v515 = vunpack.c.l.b16 %v453
        %v516 = vunpack.c.l.b16 %v454
        %v517 = vunpack.c.l.b16 %v455
        %v518 = vunpack.c.l.b16 %v456
        %v519 = vpack.c.b16 %v490, %v489
        %v520 = vpack.c.b16 %v492, %v491
        %v521 = vpack.c.b16 %v494, %v493
        %v522 = vpack.c.b16 %v496, %v495
        %v523 = vpack.c.b16 %v498, %v497
        %v524 = vpack.c.b16 %v500, %v499
        %v525 = vpack.c.b16 %v502, %v501
        %v526 = vpack.c.b16 %v504, %v503
        %v527 = vpack.c.b16 %v506, %v505
        %v528 = vpack.c.b16 %v508, %v507
        %v529 = vpack.c.b16 %v510, %v509
        %v530 = vpack.c.b16 %v512, %v511
        %v531 = vpack.c.b16 %v514, %v513
        %v532 = vpack.c.b16 %v516, %v515
        %v533 = vpack.c.b16 %v518, %v517
        %v551 = vunpack.c.l.b16 %v457
        %v552 = vunpack.c.l.b16 %v458
        %v553 = vpack.c.b16 %v552, %v551
        %v555 = vld [vmem:[#allocation4] sm:$0xff]
        %v556 = vld [vmem:[#allocation4 + $0x8] sm:$0xff]
        %v557 = vld [vmem:[#allocation4 + $0x10] sm:$0xff]
        %v558 = vld [vmem:[#allocation4 + $0x18] sm:$0xff]
        %v559 = vld [vmem:[#allocation4 + $0x20] sm:$0xff]
        %v560 = vld [vmem:[#allocation4 + $0x28] sm:$0xff]
        %v561 = vld [vmem:[#allocation4 + $0x30] sm:$0xff]
        %v562 = vld [vmem:[#allocation4 + $0x38] sm:$0xff]
        %v563 = vld [vmem:[#allocation4 + $0x40] sm:$0xff]
        %v564 = vld [vmem:[#allocation4 + $0x48] sm:$0xff]
        %v565 = vld [vmem:[#allocation4 + $0x50] sm:$0xff]
        %v566 = vld [vmem:[#allocation4 + $0x58] sm:$0xff]
        %v567 = vld [vmem:[#allocation4 + $0x60] sm:$0xff]
        %v568 = vld [vmem:[#allocation4 + $0x68] sm:$0xff]
        %v569 = vld [vmem:[#allocation4 + $0x70] sm:$0xff]
        %v570 = vld [vmem:[#allocation4 + $0x78] sm:$0xff]
        %v571 = vld [vmem:[#allocation4 + $0x80] sm:$0xff]
        %v572 = vld [vmem:[#allocation4 + $0x88] sm:$0xff]
        %v573 = vld [vmem:[#allocation4 + $0x90] sm:$0xff]
        %v574 = vld [vmem:[#allocation4 + $0x98] sm:$0xff]
        %v575 = vld [vmem:[#allocation4 + $0xa0] sm:$0xff]
        %v576 = vld [vmem:[#allocation4 + $0xa8] sm:$0xff]
        %v577 = vld [vmem:[#allocation4 + $0xb0] sm:$0xff]
        %v578 = vld [vmem:[#allocation4 + $0xb8] sm:$0xff]
        %v579 = vld [vmem:[#allocation4 + $0xc0] sm:$0xff]
        %v580 = vld [vmem:[#allocation4 + $0xc8] sm:$0xff]
        %v581 = vld [vmem:[#allocation4 + $0xd0] sm:$0xff]
        %v582 = vld [vmem:[#allocation4 + $0xd8] sm:$0xff]
        %v583 = vld [vmem:[#allocation4 + $0xe0] sm:$0xff]
        %v584 = vld [vmem:[#allocation4 + $0xe8] sm:$0xff]
        %v585 = vld [vmem:[#allocation4 + $0xf0] sm:$0xff]
        %v586 = vld [vmem:[#allocation4 + $0xf8] sm:$0xff]
        %v619 = vunpack.c.l.b16 %v555
        %v620 = vunpack.c.h.b16 %v555
        %v621 = vunpack.c.l.b16 %v556
        %v622 = vunpack.c.h.b16 %v556
        %v623 = vunpack.c.l.b16 %v557
        %v624 = vunpack.c.h.b16 %v557
        %v625 = vunpack.c.l.b16 %v558
        %v626 = vunpack.c.h.b16 %v558
        %v627 = vunpack.c.l.b16 %v559
        %v628 = vunpack.c.h.b16 %v559
        %v629 = vunpack.c.l.b16 %v560
        %v630 = vunpack.c.h.b16 %v560
        %v631 = vunpack.c.l.b16 %v561
        %v632 = vunpack.c.h.b16 %v561
        %v633 = vunpack.c.l.b16 %v562
        %v634 = vunpack.c.h.b16 %v562
        %v635 = vunpack.c.l.b16 %v563
        %v636 = vunpack.c.h.b16 %v563
        %v637 = vunpack.c.l.b16 %v564
        %v638 = vunpack.c.h.b16 %v564
        %v639 = vunpack.c.l.b16 %v565
        %v640 = vunpack.c.h.b16 %v565
        %v641 = vunpack.c.l.b16 %v566
        %v642 = vunpack.c.h.b16 %v566
        %v643 = vunpack.c.l.b16 %v567
        %v644 = vunpack.c.h.b16 %v567
        %v645 = vunpack.c.l.b16 %v568
        %v646 = vunpack.c.h.b16 %v568
        %v647 = vunpack.c.l.b16 %v569
        %v648 = vunpack.c.h.b16 %v569
        %v649 = vunpack.c.l.b16 %v570
        %v650 = vunpack.c.h.b16 %v570
        %v651 = vunpack.c.l.b16 %v571
        %v652 = vunpack.c.h.b16 %v571
        %v653 = vunpack.c.l.b16 %v572
        %v654 = vunpack.c.h.b16 %v572
        %v655 = vunpack.c.l.b16 %v573
        %v656 = vunpack.c.h.b16 %v573
        %v657 = vunpack.c.l.b16 %v574
        %v658 = vunpack.c.h.b16 %v574
        %v659 = vunpack.c.l.b16 %v575
        %v660 = vunpack.c.h.b16 %v575
        %v661 = vunpack.c.l.b16 %v576
        %v662 = vunpack.c.h.b16 %v576
        %v663 = vunpack.c.l.b16 %v577
        %v664 = vunpack.c.h.b16 %v577
        %v665 = vunpack.c.l.b16 %v578
        %v666 = vunpack.c.h.b16 %v578
        %v667 = vunpack.c.l.b16 %v579
        %v668 = vunpack.c.h.b16 %v579
        %v669 = vunpack.c.l.b16 %v580
        %v670 = vunpack.c.h.b16 %v580
        %v671 = vunpack.c.l.b16 %v581
        %v672 = vunpack.c.h.b16 %v581
        %v673 = vunpack.c.l.b16 %v582
        %v674 = vunpack.c.h.b16 %v582
        %v675 = vunpack.c.l.b16 %v583
        %v676 = vunpack.c.h.b16 %v583
        %v677 = vunpack.c.l.b16 %v584
        %v678 = vunpack.c.h.b16 %v584
        %v679 = vunpack.c.l.b16 %v585
        %v680 = vunpack.c.h.b16 %v585
        %v681 = vunpack.c.l.b16 %v586
        %v682 = vunpack.c.h.b16 %v586
        %v683 = vpack.c.b16 %v621, %v619
        %v684 = vpack.c.b16 %v622, %v620
        %v685 = vpack.c.b16 %v625, %v623
        %v686 = vpack.c.b16 %v626, %v624
        %v687 = vpack.c.b16 %v629, %v627
        %v688 = vpack.c.b16 %v630, %v628
        %v689 = vpack.c.b16 %v633, %v631
        %v690 = vpack.c.b16 %v634, %v632
        %v691 = vpack.c.b16 %v637, %v635
        %v692 = vpack.c.b16 %v638, %v636
        %v693 = vpack.c.b16 %v641, %v639
        %v694 = vpack.c.b16 %v642, %v640
        %v695 = vpack.c.b16 %v645, %v643
        %v696 = vpack.c.b16 %v646, %v644
        %v697 = vpack.c.b16 %v649, %v647
        %v698 = vpack.c.b16 %v650, %v648
        %v699 = vpack.c.b16 %v653, %v651
        %v700 = vpack.c.b16 %v654, %v652
        %v701 = vpack.c.b16 %v657, %v655
        %v702 = vpack.c.b16 %v658, %v656
        %v703 = vpack.c.b16 %v661, %v659
        %v704 = vpack.c.b16 %v662, %v660
        %v705 = vpack.c.b16 %v665, %v663
        %v706 = vpack.c.b16 %v666, %v664
        %v707 = vpack.c.b16 %v669, %v667
        %v708 = vpack.c.b16 %v670, %v668
        %v709 = vpack.c.b16 %v673, %v671
        %v710 = vpack.c.b16 %v674, %v672
        %v711 = vpack.c.b16 %v677, %v675
        %v712 = vpack.c.b16 %v678, %v676
        %v713 = vpack.c.b16 %v681, %v679
        %v714 = vpack.c.b16 %v682, %v680
        %747 = vmatprep.subr.bf16.mxu0 %v684
        %748 = vmatpush1.bf16.msra.mxu0 %v683
        %749 = vmatprep.subr.bf16.mxu0 %v686
        %750 = vmatpush1.bf16.msra.mxu0 %v685
        %751 = vmatprep.subr.bf16.mxu0 %v688
        %752 = vmatpush1.bf16.msra.mxu0 %v687
        %753 = vmatprep.subr.bf16.mxu0 %v690
        %754 = vmatpush1.bf16.msra.mxu0 %v689
        %755 = vmatprep.subr.bf16.mxu0 %v692
        %756 = vmatpush1.bf16.msra.mxu0 %v691
        %757 = vmatprep.subr.bf16.mxu0 %v694
        %758 = vmatpush1.bf16.msra.mxu0 %v693
        %759 = vmatprep.subr.bf16.mxu0 %v696
        %760 = vmatpush1.bf16.msra.mxu0 %v695
        %761 = vmatprep.subr.bf16.mxu0 %v698
        %762 = vmatpush1.bf16.msra.mxu0 %v697
        %763 = vmatprep.subr.bf16.mxu0 %v700
        %764 = vmatpush1.bf16.msra.mxu0 %v699
        %765 = vmatprep.subr.bf16.mxu0 %v702
        %766 = vmatpush1.bf16.msra.mxu0 %v701
        %767 = vmatprep.subr.bf16.mxu0 %v704
        %768 = vmatpush1.bf16.msra.mxu0 %v703
        %769 = vmatprep.subr.bf16.mxu0 %v706
        %770 = vmatpush1.bf16.msra.mxu0 %v705
        %771 = vmatprep.subr.bf16.mxu0 %v708
        %772 = vmatpush1.bf16.msra.mxu0 %v707
        %773 = vmatprep.subr.bf16.mxu0 %v710
        %774 = vmatpush1.bf16.msra.mxu0 %v709
        %775 = vmatprep.subr.bf16.mxu0 %v712
        %776 = vmatpush1.bf16.msra.mxu0 %v711
        %777 = vmatprep.subr.bf16.mxu0 %v714
        %778 = vmatpush1.bf16.msra.mxu0 %v713
        %779 = vmatprep.mubr.bf16.mxu0 %v520
        %780 = vmatmul.mubr.bf16.gmra.mrb[0].mxu0 %v519
        %v781 = vpop.f32.mrb[0].mxu0
        %v782 = vadd.f32 0.0, %v781
        %v783 = vpop.f32.mrb[0].mxu0
        %v784 = vadd.f32 0.0, %v783
        %v785 = vpop.f32.mrb[0].mxu0
        %v786 = vadd.f32 0.0, %v785
        %v787 = vpop.f32.mrb[0].mxu0
        %v788 = vadd.f32 0.0, %v787
        %789 = vmatprep.mubr.bf16.mxu0 %v521
        %790 = vmatmul.mubr.bf16.gmra.mrb[0].mxu0 %v520
        %v791 = vpop.f32.mrb[0].mxu0
        %v792 = vadd.f32 0.0, %v791
        %v793 = vpop.f32.mrb[0].mxu0
        %v794 = vadd.f32 0.0, %v793
        %v795 = vpop.f32.mrb[0].mxu0
        %v796 = vadd.f32 0.0, %v795
        %v797 = vpop.f32.mrb[0].mxu0
        %v798 = vadd.f32 0.0, %v797
        %799 = vmatprep.mubr.bf16.mxu0 %v522
        %800 = vmatmul.mubr.bf16.gmra.mrb[0].mxu0 %v521
        %v801 = vpop.f32.mrb[0].mxu0
        %v802 = vadd.f32 0.0, %v801
        %v803 = vpop.f32.mrb[0].mxu0
        %v804 = vadd.f32 0.0, %v803
        %v805 = vpop.f32.mrb[0].mxu0
        %v806 = vadd.f32 0.0, %v805
        %v807 = vpop.f32.mrb[0].mxu0
        %v808 = vadd.f32 0.0, %v807
        %809 = vmatprep.mubr.bf16.mxu0 %v523
        %810 = vmatmul.mubr.bf16.gmra.mrb[0].mxu0 %v522
        %v811 = vpop.f32.mrb[0].mxu0
        %v812 = vadd.f32 0.0, %v811
        %v813 = vpop.f32.mrb[0].mxu0
        %v814 = vadd.f32 0.0, %v813
        %v815 = vpop.f32.mrb[0].mxu0
        %v816 = vadd.f32 0.0, %v815
        %v817 = vpop.f32.mrb[0].mxu0
        %v818 = vadd.f32 0.0, %v817
        %819 = vmatprep.mubr.bf16.mxu0 %v524
        %820 = vmatmul.mubr.bf16.gmra.mrb[0].mxu0 %v523
        %v821 = vpop.f32.mrb[0].mxu0
        %v822 = vadd.f32 0.0, %v821
        %v823 = vpop.f32.mrb[0].mxu0
        %v824 = vadd.f32 0.0, %v823
        %v825 = vpop.f32.mrb[0].mxu0
        %v826 = vadd.f32 0.0, %v825
        %v827 = vpop.f32.mrb[0].mxu0
        %v828 = vadd.f32 0.0, %v827
        %829 = vmatprep.mubr.bf16.mxu0 %v525
        %830 = vmatmul.mubr.bf16.gmra.mrb[0].mxu0 %v524
        %v831 = vpop.f32.mrb[0].mxu0
        %v832 = vadd.f32 0.0, %v831
        %v833 = vpop.f32.mrb[0].mxu0
        %v834 = vadd.f32 0.0, %v833
        %v835 = vpop.f32.mrb[0].mxu0
        %v836 = vadd.f32 0.0, %v835
        %v837 = vpop.f32.mrb[0].mxu0
        %v838 = vadd.f32 0.0, %v837
        %839 = vmatprep.mubr.bf16.mxu0 %v526
        %840 = vmatmul.mubr.bf16.gmra.mrb[0].mxu0 %v525
        %v841 = vpop.f32.mrb[0].mxu0
        %v842 = vadd.f32 0.0, %v841
        %v843 = vpop.f32.mrb[0].mxu0
        %v844 = vadd.f32 0.0, %v843
        %v845 = vpop.f32.mrb[0].mxu0
        %v846 = vadd.f32 0.0, %v845
        %v847 = vpop.f32.mrb[0].mxu0
        %v848 = vadd.f32 0.0, %v847
        %849 = vmatprep.mubr.bf16.mxu0 %v527
        %850 = vmatmul.mubr.bf16.gmra.mrb[0].mxu0 %v526
        %v851 = vpop.f32.mrb[0].mxu0
        %v852 = vadd.f32 0.0, %v851
        %v853 = vpop.f32.mrb[0].mxu0
        %v854 = vadd.f32 0.0, %v853
        %v855 = vpop.f32.mrb[0].mxu0
        %v856 = vadd.f32 0.0, %v855
        %v857 = vpop.f32.mrb[0].mxu0
        %v858 = vadd.f32 0.0, %v857
        %859 = vmatprep.mubr.bf16.mxu0 %v528
        %860 = vmatmul.mubr.bf16.gmra.mrb[0].mxu0 %v527
        %v861 = vpop.f32.mrb[0].mxu0
        %v862 = vadd.f32 0.0, %v861
        %v863 = vpop.f32.mrb[0].mxu0
        %v864 = vadd.f32 0.0, %v863
        %v865 = vpop.f32.mrb[0].mxu0
        %v866 = vadd.f32 0.0, %v865
        %v867 = vpop.f32.mrb[0].mxu0
        %v868 = vadd.f32 0.0, %v867
        %869 = vmatprep.mubr.bf16.mxu0 %v529
        %870 = vmatmul.mubr.bf16.gmra.mrb[0].mxu0 %v528
        %v871 = vpop.f32.mrb[0].mxu0
        %v872 = vadd.f32 0.0, %v871
        %v873 = vpop.f32.mrb[0].mxu0
        %v874 = vadd.f32 0.0, %v873
        %v875 = vpop.f32.mrb[0].mxu0
        %v876 = vadd.f32 0.0, %v875
        %v877 = vpop.f32.mrb[0].mxu0
        %v878 = vadd.f32 0.0, %v877
        %879 = vmatprep.mubr.bf16.mxu0 %v530
        %880 = vmatmul.mubr.bf16.gmra.mrb[0].mxu0 %v529
        %v881 = vpop.f32.mrb[0].mxu0
        %v882 = vadd.f32 0.0, %v881
        %v883 = vpop.f32.mrb[0].mxu0
        %v884 = vadd.f32 0.0, %v883
        %v885 = vpop.f32.mrb[0].mxu0
        %v886 = vadd.f32 0.0, %v885
        %v887 = vpop.f32.mrb[0].mxu0
        %v888 = vadd.f32 0.0, %v887
        %889 = vmatprep.mubr.bf16.mxu0 %v531
        %890 = vmatmul.mubr.bf16.gmra.mrb[0].mxu0 %v530
        %v891 = vpop.f32.mrb[0].mxu0
        %v892 = vadd.f32 0.0, %v891
        %v893 = vpop.f32.mrb[0].mxu0
        %v894 = vadd.f32 0.0, %v893
        %v895 = vpop.f32.mrb[0].mxu0
        %v896 = vadd.f32 0.0, %v895
        %v897 = vpop.f32.mrb[0].mxu0
        %v898 = vadd.f32 0.0, %v897
        %899 = vmatprep.mubr.bf16.mxu0 %v532
        %900 = vmatmul.mubr.bf16.gmra.mrb[0].mxu0 %v531
        %v901 = vpop.f32.mrb[0].mxu0
        %v902 = vadd.f32 0.0, %v901
        %v903 = vpop.f32.mrb[0].mxu0
        %v904 = vadd.f32 0.0, %v903
        %v905 = vpop.f32.mrb[0].mxu0
        %v906 = vadd.f32 0.0, %v905
        %v907 = vpop.f32.mrb[0].mxu0
        %v908 = vadd.f32 0.0, %v907
        %909 = vmatprep.mubr.bf16.mxu0 %v533
        %910 = vmatmul.mubr.bf16.gmra.mrb[0].mxu0 %v532
        %v911 = vpop.f32.mrb[0].mxu0
        %v912 = vadd.f32 0.0, %v911
        %v913 = vpop.f32.mrb[0].mxu0
        %v914 = vadd.f32 0.0, %v913
        %v915 = vpop.f32.mrb[0].mxu0
        %v916 = vadd.f32 0.0, %v915
        %v917 = vpop.f32.mrb[0].mxu0
        %v918 = vadd.f32 0.0, %v917
        %919 = vmatprep.mubr.bf16.mxu0 %v553
        %920 = vmatmul.mubr.bf16.gmra.mrb[0].mxu0 %v533
        %v921 = vpop.f32.mrb[0].mxu0
        %v922 = vadd.f32 0.0, %v921
        %v923 = vpop.f32.mrb[0].mxu0
        %v924 = vadd.f32 0.0, %v923
        %v925 = vpop.f32.mrb[0].mxu0
        %v926 = vadd.f32 0.0, %v925
        %v927 = vpop.f32.mrb[0].mxu0
        %v928 = vadd.f32 0.0, %v927
        %929 = vdwg.mxu0
        %v930 = vrot.slane %v784, 1
        %v931 = vrot.slane %v788, 1
        %v932 = vrot.slane %v794, 1
        %v933 = vrot.slane %v798, 1
        %v934 = vrot.slane %v804, 1
        %v935 = vrot.slane %v808, 1
        %v936 = vrot.slane %v814, 1
        %v937 = vrot.slane %v818, 1
        %v938 = vrot.slane %v824, 1
        %v939 = vrot.slane %v828, 1
        %v940 = vrot.slane %v834, 1
        %v941 = vrot.slane %v838, 1
        %v942 = vrot.slane %v844, 1
        %v943 = vrot.slane %v848, 1
        %v944 = vrot.slane %v854, 1
        %v945 = vrot.slane %v858, 1
        %v946 = vrot.slane %v864, 1
        %v947 = vrot.slane %v868, 1
        %v948 = vrot.slane %v874, 1
        %v949 = vrot.slane %v878, 1
        %v950 = vrot.slane %v884, 1
        %v951 = vrot.slane %v888, 1
        %v952 = vrot.slane %v894, 1
        %v953 = vrot.slane %v898, 1
        %v954 = vrot.slane %v904, 1
        %v955 = vrot.slane %v908, 1
        %v956 = vrot.slane %v914, 1
        %v957 = vrot.slane %v918, 1
        %v958 = vrot.slane %v924, 1
        %v959 = vrot.slane %v928, 1
        %v960 = vlaneseq
        %v961 = vshrl.u32 %v960, 7
        %vm962 = vcmp.lt.s32.totalorder %v961, 7
        %v963 = vsel %vm962, %v958, %v959
        %v964 = vsel %vm962, %v957, %v958
        %v965 = vsel %vm962, %v956, %v957
        %v966 = vsel %vm962, %v955, %v956
        %v967 = vsel %vm962, %v954, %v955
        %v968 = vsel %vm962, %v953, %v954
        %v969 = vsel %vm962, %v952, %v953
        %v970 = vsel %vm962, %v951, %v952
        %v971 = vsel %vm962, %v950, %v951
        %v972 = vsel %vm962, %v949, %v950
        %v973 = vsel %vm962, %v948, %v949
        %v974 = vsel %vm962, %v947, %v948
        %v975 = vsel %vm962, %v946, %v947
        %v976 = vsel %vm962, %v945, %v946
        %v977 = vsel %vm962, %v944, %v945
        %v978 = vsel %vm962, %v943, %v944
        %v979 = vsel %vm962, %v942, %v943
        %v980 = vsel %vm962, %v941, %v942
        %v981 = vsel %vm962, %v940, %v941
        %v982 = vsel %vm962, %v939, %v940
        %v983 = vsel %vm962, %v938, %v939
        %v984 = vsel %vm962, %v937, %v938
        %v985 = vsel %vm962, %v936, %v937
        %v986 = vsel %vm962, %v935, %v936
        %v987 = vsel %vm962, %v934, %v935
        %v988 = vsel %vm962, %v933, %v934
        %v989 = vsel %vm962, %v932, %v933
        %v990 = vsel %vm962, %v931, %v932
        %v991 = vsel %vm962, %v930, %v931
        %v992 = vsel %vm962, %v959, %v930
        %v993 = vadd.f32 %v782, %v991
        %v994 = vadd.f32 %v786, %v990
        %v995 = vadd.f32 %v792, %v989
        %v996 = vadd.f32 %v796, %v988
        %v997 = vadd.f32 %v802, %v987
        %v998 = vadd.f32 %v806, %v986
        %v999 = vadd.f32 %v812, %v985
        %v1000 = vadd.f32 %v816, %v984
        %v1001 = vadd.f32 %v822, %v983
        %v1002 = vadd.f32 %v826, %v982
        %v1003 = vadd.f32 %v832, %v981
        %v1004 = vadd.f32 %v836, %v980
        %v1005 = vadd.f32 %v842, %v979
        %v1006 = vadd.f32 %v846, %v978
        %v1007 = vadd.f32 %v852, %v977
        %v1008 = vadd.f32 %v856, %v976
        %v1009 = vadd.f32 %v862, %v975
        %v1010 = vadd.f32 %v866, %v974
        %v1011 = vadd.f32 %v872, %v973
        %v1012 = vadd.f32 %v876, %v972
        %v1013 = vadd.f32 %v882, %v971
        %v1014 = vadd.f32 %v886, %v970
        %v1015 = vadd.f32 %v892, %v969
        %v1016 = vadd.f32 %v896, %v968
        %v1017 = vadd.f32 %v902, %v967
        %v1018 = vadd.f32 %v906, %v966
        %v1019 = vadd.f32 %v912, %v965
        %v1020 = vadd.f32 %v916, %v964
        %v1021 = vadd.f32 %v922, %v963
        %v1022 = vadd.f32 %v926, %v992
        %v1023 = vld [vmem:[%s2] sm:$0x1]
        %v1025 = vlaneseq
        %v1026 = vshrl.u32 %v1025, 7
        %v1027 = vsub.s32 0, %v1026
        %v1028 = vrot.slane %v1023, %v1027
        %v1030 = vadd.f32 %v993, %v1028
        %v1031 = vadd.f32 %v994, %v1028
        %v1032 = vadd.f32 %v995, %v1028
        %v1033 = vadd.f32 %v996, %v1028
        %v1034 = vadd.f32 %v997, %v1028
        %v1035 = vadd.f32 %v998, %v1028
        %v1036 = vadd.f32 %v999, %v1028
        %v1037 = vadd.f32 %v1000, %v1028
        %v1038 = vadd.f32 %v1001, %v1028
        %v1039 = vadd.f32 %v1002, %v1028
        %v1040 = vadd.f32 %v1003, %v1028
        %v1041 = vadd.f32 %v1004, %v1028
        %v1042 = vadd.f32 %v1005, %v1028
        %v1043 = vadd.f32 %v1006, %v1028
        %v1044 = vadd.f32 %v1007, %v1028
        %v1045 = vadd.f32 %v1008, %v1028
        %v1046 = vadd.f32 %v1009, %v1028
        %v1047 = vadd.f32 %v1010, %v1028
        %v1048 = vadd.f32 %v1011, %v1028
        %v1049 = vadd.f32 %v1012, %v1028
        %v1050 = vadd.f32 %v1013, %v1028
        %v1051 = vadd.f32 %v1014, %v1028
        %v1052 = vadd.f32 %v1015, %v1028
        %v1053 = vadd.f32 %v1016, %v1028
        %v1054 = vadd.f32 %v1017, %v1028
        %v1055 = vadd.f32 %v1018, %v1028
        %v1056 = vadd.f32 %v1019, %v1028
        %v1057 = vadd.f32 %v1020, %v1028
        %v1058 = vadd.f32 %v1021, %v1028
        %v1059 = vadd.f32 %v1022, %v1028
        %v1060 = vpack.c.bf16 %v1031, %v1030
        %v1061 = vpack.c.bf16 %v1033, %v1032
        %v1062 = vpack.c.bf16 %v1035, %v1034
        %v1063 = vpack.c.bf16 %v1037, %v1036
        %v1064 = vpack.c.bf16 %v1039, %v1038
        %v1065 = vpack.c.bf16 %v1041, %v1040
        %v1066 = vpack.c.bf16 %v1043, %v1042
        %v1067 = vpack.c.bf16 %v1045, %v1044
        %v1068 = vpack.c.bf16 %v1047, %v1046
        %v1069 = vpack.c.bf16 %v1049, %v1048
        %v1070 = vpack.c.bf16 %v1051, %v1050
        %v1071 = vpack.c.bf16 %v1053, %v1052
        %v1072 = vpack.c.bf16 %v1055, %v1054
        %v1073 = vpack.c.bf16 %v1057, %v1056
        %v1074 = vpack.c.bf16 %v1059, %v1058
        %v1075 = vtanh.bf16.pop %v1060
        %v1076 = vtanh.bf16.pop %v1061
        %v1077 = vtanh.bf16.pop %v1062
        %v1078 = vtanh.bf16.pop %v1063
        %v1079 = vtanh.bf16.pop %v1064
        %v1080 = vtanh.bf16.pop %v1065
        %v1081 = vtanh.bf16.pop %v1066
        %v1082 = vtanh.bf16.pop %v1067
        %v1083 = vtanh.bf16.pop %v1068
        %v1084 = vtanh.bf16.pop %v1069
        %v1085 = vtanh.bf16.pop %v1070
        %v1086 = vtanh.bf16.pop %v1071
        %v1087 = vtanh.bf16.pop %v1072
        %v1088 = vtanh.bf16.pop %v1073
        %v1089 = vtanh.bf16.pop %v1074
        %v1090 = vld [vmem:[#allocation6] sm:$0xff]
        %v1091 = vld [vmem:[#allocation6 + $0x8] sm:$0xff]
        %v1092 = vld [vmem:[#allocation6 + $0x10] sm:$0xff]
        %v1093 = vld [vmem:[#allocation6 + $0x18] sm:$0xff]
        %v1094 = vld [vmem:[#allocation6 + $0x20] sm:$0xff]
        %v1095 = vld [vmem:[#allocation6 + $0x28] sm:$0xff]
        %v1096 = vld [vmem:[#allocation6 + $0x30] sm:$0xff]
        %v1097 = vld [vmem:[#allocation6 + $0x38] sm:$0xff]
        %v1098 = vld [vmem:[#allocation6 + $0x40] sm:$0xff]
        %v1099 = vld [vmem:[#allocation6 + $0x48] sm:$0xff]
        %v1100 = vld [vmem:[#allocation6 + $0x50] sm:$0xff]
        %v1101 = vld [vmem:[#allocation6 + $0x58] sm:$0xff]
        %v1102 = vld [vmem:[#allocation6 + $0x60] sm:$0xff]
        %v1103 = vld [vmem:[#allocation6 + $0x68] sm:$0xff]
        %v1104 = vld [vmem:[#allocation6 + $0x70] sm:$0xff]
        %v1105 = vld [vmem:[#allocation6 + $0x78] sm:$0xff]
        %v1106 = vld [vmem:[#allocation6 + $0x80] sm:$0xff]
        %v1107 = vld [vmem:[#allocation6 + $0x88] sm:$0xff]
        %v1108 = vld [vmem:[#allocation6 + $0x90] sm:$0xff]
        %v1109 = vld [vmem:[#allocation6 + $0x98] sm:$0xff]
        %v1110 = vld [vmem:[#allocation6 + $0xa0] sm:$0xff]
        %v1111 = vld [vmem:[#allocation6 + $0xa8] sm:$0xff]
        %v1112 = vld [vmem:[#allocation6 + $0xb0] sm:$0xff]
        %v1113 = vld [vmem:[#allocation6 + $0xb8] sm:$0xff]
        %v1114 = vld [vmem:[#allocation6 + $0xc0] sm:$0xff]
        %v1115 = vld [vmem:[#allocation6 + $0xc8] sm:$0xff]
        %v1116 = vld [vmem:[#allocation6 + $0xd0] sm:$0xff]
        %v1117 = vld [vmem:[#allocation6 + $0xd8] sm:$0xff]
        %v1118 = vld [vmem:[#allocation6 + $0xe0] sm:$0xff]
        %v1119 = vld [vmem:[#allocation6 + $0xe8] sm:$0xff]
        %v1120 = vld [vmem:[#allocation6 + $0xf0] sm:$0xff]
        %v1121 = vld [vmem:[#allocation6 + $0xf8] sm:$0xff]
        %v1154 = vunpack.c.l.b16 %v1090
        %v1155 = vunpack.c.h.b16 %v1090
        %v1156 = vunpack.c.l.b16 %v1091
        %v1157 = vunpack.c.h.b16 %v1091
        %v1158 = vunpack.c.l.b16 %v1092
        %v1159 = vunpack.c.h.b16 %v1092
        %v1160 = vunpack.c.l.b16 %v1093
        %v1161 = vunpack.c.h.b16 %v1093
        %v1162 = vunpack.c.l.b16 %v1094
        %v1163 = vunpack.c.h.b16 %v1094
        %v1164 = vunpack.c.l.b16 %v1095
        %v1165 = vunpack.c.h.b16 %v1095
        %v1166 = vunpack.c.l.b16 %v1096
        %v1167 = vunpack.c.h.b16 %v1096
        %v1168 = vunpack.c.l.b16 %v1097
        %v1169 = vunpack.c.h.b16 %v1097
        %v1170 = vunpack.c.l.b16 %v1098
        %v1171 = vunpack.c.h.b16 %v1098
        %v1172 = vunpack.c.l.b16 %v1099
        %v1173 = vunpack.c.h.b16 %v1099
        %v1174 = vunpack.c.l.b16 %v1100
        %v1175 = vunpack.c.h.b16 %v1100
        %v1176 = vunpack.c.l.b16 %v1101
        %v1177 = vunpack.c.h.b16 %v1101
        %v1178 = vunpack.c.l.b16 %v1102
        %v1179 = vunpack.c.h.b16 %v1102
        %v1180 = vunpack.c.l.b16 %v1103
        %v1181 = vunpack.c.h.b16 %v1103
        %v1182 = vunpack.c.l.b16 %v1104
        %v1183 = vunpack.c.h.b16 %v1104
        %v1184 = vunpack.c.l.b16 %v1105
        %v1185 = vunpack.c.h.b16 %v1105
        %v1186 = vunpack.c.l.b16 %v1106
        %v1187 = vunpack.c.h.b16 %v1106
        %v1188 = vunpack.c.l.b16 %v1107
        %v1189 = vunpack.c.h.b16 %v1107
        %v1190 = vunpack.c.l.b16 %v1108
        %v1191 = vunpack.c.h.b16 %v1108
        %v1192 = vunpack.c.l.b16 %v1109
        %v1193 = vunpack.c.h.b16 %v1109
        %v1194 = vunpack.c.l.b16 %v1110
        %v1195 = vunpack.c.h.b16 %v1110
        %v1196 = vunpack.c.l.b16 %v1111
        %v1197 = vunpack.c.h.b16 %v1111
        %v1198 = vunpack.c.l.b16 %v1112
        %v1199 = vunpack.c.h.b16 %v1112
        %v1200 = vunpack.c.l.b16 %v1113
        %v1201 = vunpack.c.h.b16 %v1113
        %v1202 = vunpack.c.l.b16 %v1114
        %v1203 = vunpack.c.h.b16 %v1114
        %v1204 = vunpack.c.l.b16 %v1115
        %v1205 = vunpack.c.h.b16 %v1115
        %v1206 = vunpack.c.l.b16 %v1116
        %v1207 = vunpack.c.h.b16 %v1116
        %v1208 = vunpack.c.l.b16 %v1117
        %v1209 = vunpack.c.h.b16 %v1117
        %v1210 = vunpack.c.l.b16 %v1118
        %v1211 = vunpack.c.h.b16 %v1118
        %v1212 = vunpack.c.l.b16 %v1119
        %v1213 = vunpack.c.h.b16 %v1119
        %v1214 = vunpack.c.l.b16 %v1120
        %v1215 = vunpack.c.h.b16 %v1120
        %v1216 = vunpack.c.l.b16 %v1121
        %v1217 = vunpack.c.h.b16 %v1121
        %v1218 = vpack.c.b16 %v1156, %v1154
        %v1219 = vpack.c.b16 %v1157, %v1155
        %v1220 = vpack.c.b16 %v1160, %v1158
        %v1221 = vpack.c.b16 %v1161, %v1159
        %v1222 = vpack.c.b16 %v1164, %v1162
        %v1223 = vpack.c.b16 %v1165, %v1163
        %v1224 = vpack.c.b16 %v1168, %v1166
        %v1225 = vpack.c.b16 %v1169, %v1167
        %v1226 = vpack.c.b16 %v1172, %v1170
        %v1227 = vpack.c.b16 %v1173, %v1171
        %v1228 = vpack.c.b16 %v1176, %v1174
        %v1229 = vpack.c.b16 %v1177, %v1175
        %v1230 = vpack.c.b16 %v1180, %v1178
        %v1231 = vpack.c.b16 %v1181, %v1179
        %v1232 = vpack.c.b16 %v1184, %v1182
        %v1233 = vpack.c.b16 %v1185, %v1183
        %v1234 = vpack.c.b16 %v1188, %v1186
        %v1235 = vpack.c.b16 %v1189, %v1187
        %v1236 = vpack.c.b16 %v1192, %v1190
        %v1237 = vpack.c.b16 %v1193, %v1191
        %v1238 = vpack.c.b16 %v1196, %v1194
        %v1239 = vpack.c.b16 %v1197, %v1195
        %v1240 = vpack.c.b16 %v1200, %v1198
        %v1241 = vpack.c.b16 %v1201, %v1199
        %v1242 = vpack.c.b16 %v1204, %v1202
        %v1243 = vpack.c.b16 %v1205, %v1203
        %v1244 = vpack.c.b16 %v1208, %v1206
        %v1245 = vpack.c.b16 %v1209, %v1207
        %v1246 = vpack.c.b16 %v1212, %v1210
        %v1247 = vpack.c.b16 %v1213, %v1211
        %v1248 = vpack.c.b16 %v1216, %v1214
        %v1249 = vpack.c.b16 %v1217, %v1215
        %1282 = vmatprep.subr.bf16.mxu0 %v1219
        %1283 = vmatpush1.bf16.msra.mxu0 %v1218
        %1284 = vmatprep.subr.bf16.mxu0 %v1221
        %1285 = vmatpush1.bf16.msra.mxu0 %v1220
        %1286 = vmatprep.subr.bf16.mxu0 %v1223
        %1287 = vmatpush1.bf16.msra.mxu0 %v1222
        %1288 = vmatprep.subr.bf16.mxu0 %v1225
        %1289 = vmatpush1.bf16.msra.mxu0 %v1224
        %1290 = vmatprep.subr.bf16.mxu0 %v1227
        %1291 = vmatpush1.bf16.msra.mxu0 %v1226
        %1292 = vmatprep.subr.bf16.mxu0 %v1229
        %1293 = vmatpush1.bf16.msra.mxu0 %v1228
        %1294 = vmatprep.subr.bf16.mxu0 %v1231
        %1295 = vmatpush1.bf16.msra.mxu0 %v1230
        %1296 = vmatprep.subr.bf16.mxu0 %v1233
        %1297 = vmatpush1.bf16.msra.mxu0 %v1232
        %1298 = vmatprep.subr.bf16.mxu0 %v1235
        %1299 = vmatpush1.bf16.msra.mxu0 %v1234
        %1300 = vmatprep.subr.bf16.mxu0 %v1237
        %1301 = vmatpush1.bf16.msra.mxu0 %v1236
        %1302 = vmatprep.subr.bf16.mxu0 %v1239
        %1303 = vmatpush1.bf16.msra.mxu0 %v1238
        %1304 = vmatprep.subr.bf16.mxu0 %v1241
        %1305 = vmatpush1.bf16.msra.mxu0 %v1240
        %1306 = vmatprep.subr.bf16.mxu0 %v1243
        %1307 = vmatpush1.bf16.msra.mxu0 %v1242
        %1308 = vmatprep.subr.bf16.mxu0 %v1245
        %1309 = vmatpush1.bf16.msra.mxu0 %v1244
        %1310 = vmatprep.subr.bf16.mxu0 %v1247
        %1311 = vmatpush1.bf16.msra.mxu0 %v1246
        %1312 = vmatprep.subr.bf16.mxu0 %v1249
        %1313 = vmatpush1.bf16.msra.mxu0 %v1248
        %1314 = vmatprep.mubr.bf16.mxu0 %v1076
        %1315 = vmatmul.mubr.bf16.gmra.mrb[0].mxu0 %v1075
        %v1316 = vpop.f32.mrb[0].mxu0
        %v1317 = vadd.f32 0.0, %v1316
        %v1318 = vpop.f32.mrb[0].mxu0
        %v1319 = vadd.f32 0.0, %v1318
        %v1320 = vpop.f32.mrb[0].mxu0
        %v1321 = vadd.f32 0.0, %v1320
        %v1322 = vpop.f32.mrb[0].mxu0
        %v1323 = vadd.f32 0.0, %v1322
        %1324 = vmatprep.mubr.bf16.mxu0 %v1077
        %1325 = vmatmul.mubr.bf16.gmra.mrb[0].mxu0 %v1076
        %v1326 = vpop.f32.mrb[0].mxu0
        %v1327 = vadd.f32 0.0, %v1326
        %v1328 = vpop.f32.mrb[0].mxu0
        %v1329 = vadd.f32 0.0, %v1328
        %v1330 = vpop.f32.mrb[0].mxu0
        %v1331 = vadd.f32 0.0, %v1330
        %v1332 = vpop.f32.mrb[0].mxu0
        %v1333 = vadd.f32 0.0, %v1332
        %1334 = vmatprep.mubr.bf16.mxu0 %v1078
        %1335 = vmatmul.mubr.bf16.gmra.mrb[0].mxu0 %v1077
        %v1336 = vpop.f32.mrb[0].mxu0
        %v1337 = vadd.f32 0.0, %v1336
        %v1338 = vpop.f32.mrb[0].mxu0
        %v1339 = vadd.f32 0.0, %v1338
        %v1340 = vpop.f32.mrb[0].mxu0
        %v1341 = vadd.f32 0.0, %v1340
        %v1342 = vpop.f32.mrb[0].mxu0
        %v1343 = vadd.f32 0.0, %v1342
        %1344 = vmatprep.mubr.bf16.mxu0 %v1079
        %1345 = vmatmul.mubr.bf16.gmra.mrb[0].mxu0 %v1078
        %v1346 = vpop.f32.mrb[0].mxu0
        %v1347 = vadd.f32 0.0, %v1346
        %v1348 = vpop.f32.mrb[0].mxu0
        %v1349 = vadd.f32 0.0, %v1348
        %v1350 = vpop.f32.mrb[0].mxu0
        %v1351 = vadd.f32 0.0, %v1350
        %v1352 = vpop.f32.mrb[0].mxu0
        %v1353 = vadd.f32 0.0, %v1352
        %1354 = vmatprep.mubr.bf16.mxu0 %v1080
        %1355 = vmatmul.mubr.bf16.gmra.mrb[0].mxu0 %v1079
        %v1356 = vpop.f32.mrb[0].mxu0
        %v1357 = vadd.f32 0.0, %v1356
        %v1358 = vpop.f32.mrb[0].mxu0
        %v1359 = vadd.f32 0.0, %v1358
        %v1360 = vpop.f32.mrb[0].mxu0
        %v1361 = vadd.f32 0.0, %v1360
        %v1362 = vpop.f32.mrb[0].mxu0
        %v1363 = vadd.f32 0.0, %v1362
        %1364 = vmatprep.mubr.bf16.mxu0 %v1081
        %1365 = vmatmul.mubr.bf16.gmra.mrb[0].mxu0 %v1080
        %v1366 = vpop.f32.mrb[0].mxu0
        %v1367 = vadd.f32 0.0, %v1366
        %v1368 = vpop.f32.mrb[0].mxu0
        %v1369 = vadd.f32 0.0, %v1368
        %v1370 = vpop.f32.mrb[0].mxu0
        %v1371 = vadd.f32 0.0, %v1370
        %v1372 = vpop.f32.mrb[0].mxu0
        %v1373 = vadd.f32 0.0, %v1372
        %1374 = vmatprep.mubr.bf16.mxu0 %v1082
        %1375 = vmatmul.mubr.bf16.gmra.mrb[0].mxu0 %v1081
        %v1376 = vpop.f32.mrb[0].mxu0
        %v1377 = vadd.f32 0.0, %v1376
        %v1378 = vpop.f32.mrb[0].mxu0
        %v1379 = vadd.f32 0.0, %v1378
        %v1380 = vpop.f32.mrb[0].mxu0
        %v1381 = vadd.f32 0.0, %v1380
        %v1382 = vpop.f32.mrb[0].mxu0
        %v1383 = vadd.f32 0.0, %v1382
        %1384 = vmatprep.mubr.bf16.mxu0 %v1083
        %1385 = vmatmul.mubr.bf16.gmra.mrb[0].mxu0 %v1082
        %v1386 = vpop.f32.mrb[0].mxu0
        %v1387 = vadd.f32 0.0, %v1386
        %v1388 = vpop.f32.mrb[0].mxu0
        %v1389 = vadd.f32 0.0, %v1388
        %v1390 = vpop.f32.mrb[0].mxu0
        %v1391 = vadd.f32 0.0, %v1390
        %v1392 = vpop.f32.mrb[0].mxu0
        %v1393 = vadd.f32 0.0, %v1392
        %1394 = vmatprep.mubr.bf16.mxu0 %v1084
        %1395 = vmatmul.mubr.bf16.gmra.mrb[0].mxu0 %v1083
        %v1396 = vpop.f32.mrb[0].mxu0
        %v1397 = vadd.f32 0.0, %v1396
        %v1398 = vpop.f32.mrb[0].mxu0
        %v1399 = vadd.f32 0.0, %v1398
        %v1400 = vpop.f32.mrb[0].mxu0
        %v1401 = vadd.f32 0.0, %v1400
        %v1402 = vpop.f32.mrb[0].mxu0
        %v1403 = vadd.f32 0.0, %v1402
        %1404 = vmatprep.mubr.bf16.mxu0 %v1085
        %1405 = vmatmul.mubr.bf16.gmra.mrb[0].mxu0 %v1084
        %v1406 = vpop.f32.mrb[0].mxu0
        %v1407 = vadd.f32 0.0, %v1406
        %v1408 = vpop.f32.mrb[0].mxu0
        %v1409 = vadd.f32 0.0, %v1408
        %v1410 = vpop.f32.mrb[0].mxu0
        %v1411 = vadd.f32 0.0, %v1410
        %v1412 = vpop.f32.mrb[0].mxu0
        %v1413 = vadd.f32 0.0, %v1412
        %1414 = vmatprep.mubr.bf16.mxu0 %v1086
        %1415 = vmatmul.mubr.bf16.gmra.mrb[0].mxu0 %v1085
        %v1416 = vpop.f32.mrb[0].mxu0
        %v1417 = vadd.f32 0.0, %v1416
        %v1418 = vpop.f32.mrb[0].mxu0
        %v1419 = vadd.f32 0.0, %v1418
        %v1420 = vpop.f32.mrb[0].mxu0
        %v1421 = vadd.f32 0.0, %v1420
        %v1422 = vpop.f32.mrb[0].mxu0
        %v1423 = vadd.f32 0.0, %v1422
        %1424 = vmatprep.mubr.bf16.mxu0 %v1087
        %1425 = vmatmul.mubr.bf16.gmra.mrb[0].mxu0 %v1086
        %v1426 = vpop.f32.mrb[0].mxu0
        %v1427 = vadd.f32 0.0, %v1426
        %v1428 = vpop.f32.mrb[0].mxu0
        %v1429 = vadd.f32 0.0, %v1428
        %v1430 = vpop.f32.mrb[0].mxu0
        %v1431 = vadd.f32 0.0, %v1430
        %v1432 = vpop.f32.mrb[0].mxu0
        %v1433 = vadd.f32 0.0, %v1432
        %1434 = vmatprep.mubr.bf16.mxu0 %v1088
        %1435 = vmatmul.mubr.bf16.gmra.mrb[0].mxu0 %v1087
        %v1436 = vpop.f32.mrb[0].mxu0
        %v1437 = vadd.f32 0.0, %v1436
        %v1438 = vpop.f32.mrb[0].mxu0
        %v1439 = vadd.f32 0.0, %v1438
        %v1440 = vpop.f32.mrb[0].mxu0
        %v1441 = vadd.f32 0.0, %v1440
        %v1442 = vpop.f32.mrb[0].mxu0
        %v1443 = vadd.f32 0.0, %v1442
        %1444 = vmatprep.mubr.bf16.mxu0 %v1089
        %1445 = vmatmul.mubr.bf16.gmra.mrb[0].mxu0 %v1088
        %v1446 = vpop.f32.mrb[0].mxu0
        %v1447 = vadd.f32 0.0, %v1446
        %v1448 = vpop.f32.mrb[0].mxu0
        %v1449 = vadd.f32 0.0, %v1448
        %v1450 = vpop.f32.mrb[0].mxu0
        %v1451 = vadd.f32 0.0, %v1450
        %v1452 = vpop.f32.mrb[0].mxu0
        %v1453 = vadd.f32 0.0, %v1452
        %1454 = vdwg.mxu0
        %v1455 = vrot.slane %v1319, 1
        %v1456 = vrot.slane %v1323, 1
        %v1457 = vrot.slane %v1329, 1
        %v1458 = vrot.slane %v1333, 1
        %v1459 = vrot.slane %v1339, 1
        %v1460 = vrot.slane %v1343, 1
        %v1461 = vrot.slane %v1349, 1
        %v1462 = vrot.slane %v1353, 1
        %v1463 = vrot.slane %v1359, 1
        %v1464 = vrot.slane %v1363, 1
        %v1465 = vrot.slane %v1369, 1
        %v1466 = vrot.slane %v1373, 1
        %v1467 = vrot.slane %v1379, 1
        %v1468 = vrot.slane %v1383, 1
        %v1469 = vrot.slane %v1389, 1
        %v1470 = vrot.slane %v1393, 1
        %v1471 = vrot.slane %v1399, 1
        %v1472 = vrot.slane %v1403, 1
        %v1473 = vrot.slane %v1409, 1
        %v1474 = vrot.slane %v1413, 1
        %v1475 = vrot.slane %v1419, 1
        %v1476 = vrot.slane %v1423, 1
        %v1477 = vrot.slane %v1429, 1
        %v1478 = vrot.slane %v1433, 1
        %v1479 = vrot.slane %v1439, 1
        %v1480 = vrot.slane %v1443, 1
        %v1481 = vrot.slane %v1449, 1
        %v1482 = vrot.slane %v1453, 1
        %v1483 = vsel %vm962, %v1481, %v1482
        %v1484 = vsel %vm962, %v1480, %v1481
        %v1485 = vsel %vm962, %v1479, %v1480
        %v1486 = vsel %vm962, %v1478, %v1479
        %v1487 = vsel %vm962, %v1477, %v1478
        %v1488 = vsel %vm962, %v1476, %v1477
        %v1489 = vsel %vm962, %v1475, %v1476
        %v1490 = vsel %vm962, %v1474, %v1475
        %v1491 = vsel %vm962, %v1473, %v1474
        %v1492 = vsel %vm962, %v1472, %v1473
        %v1493 = vsel %vm962, %v1471, %v1472
        %v1494 = vsel %vm962, %v1470, %v1471
        %v1495 = vsel %vm962, %v1469, %v1470
        %v1496 = vsel %vm962, %v1468, %v1469
        %v1497 = vsel %vm962, %v1467, %v1468
        %v1498 = vsel %vm962, %v1466, %v1467
        %v1499 = vsel %vm962, %v1465, %v1466
        %v1500 = vsel %vm962, %v1464, %v1465
        %v1501 = vsel %vm962, %v1463, %v1464
        %v1502 = vsel %vm962, %v1462, %v1463
        %v1503 = vsel %vm962, %v1461, %v1462
        %v1504 = vsel %vm962, %v1460, %v1461
        %v1505 = vsel %vm962, %v1459, %v1460
        %v1506 = vsel %vm962, %v1458, %v1459
        %v1507 = vsel %vm962, %v1457, %v1458
        %v1508 = vsel %vm962, %v1456, %v1457
        %v1509 = vsel %vm962, %v1455, %v1456
        %v1510 = vsel %vm962, %v1482, %v1455
        %v1511 = vadd.f32 %v1317, %v1509
        %v1512 = vadd.f32 %v1321, %v1508
        %v1513 = vadd.f32 %v1327, %v1507
        %v1514 = vadd.f32 %v1331, %v1506
        %v1515 = vadd.f32 %v1337, %v1505
        %v1516 = vadd.f32 %v1341, %v1504
        %v1517 = vadd.f32 %v1347, %v1503
        %v1518 = vadd.f32 %v1351, %v1502
        %v1519 = vadd.f32 %v1357, %v1501
        %v1520 = vadd.f32 %v1361, %v1500
        %v1521 = vadd.f32 %v1367, %v1499
        %v1522 = vadd.f32 %v1371, %v1498
        %v1523 = vadd.f32 %v1377, %v1497
        %v1524 = vadd.f32 %v1381, %v1496
        %v1525 = vadd.f32 %v1387, %v1495
        %v1526 = vadd.f32 %v1391, %v1494
        %v1527 = vadd.f32 %v1397, %v1493
        %v1528 = vadd.f32 %v1401, %v1492
        %v1529 = vadd.f32 %v1407, %v1491
        %v1530 = vadd.f32 %v1411, %v1490
        %v1531 = vadd.f32 %v1417, %v1489
        %v1532 = vadd.f32 %v1421, %v1488
        %v1533 = vadd.f32 %v1427, %v1487
        %v1534 = vadd.f32 %v1431, %v1486
        %v1535 = vadd.f32 %v1437, %v1485
        %v1536 = vadd.f32 %v1441, %v1484
        %v1537 = vadd.f32 %v1447, %v1483
        %v1538 = vadd.f32 %v1451, %v1510
        %v1539 = vld [vmem:[%s4] sm:$0x1]
        %v1541 = vlaneseq
        %v1542 = vshrl.u32 %v1541, 7
        %v1543 = vsub.s32 0, %v1542
        %v1544 = vrot.slane %v1539, %v1543
        %v1546 = vadd.f32 %v1511, %v1544
        %v1547 = vadd.f32 %v1512, %v1544
        %v1548 = vadd.f32 %v1513, %v1544
        %v1549 = vadd.f32 %v1514, %v1544
        %v1550 = vadd.f32 %v1515, %v1544
        %v1551 = vadd.f32 %v1516, %v1544
        %v1552 = vadd.f32 %v1517, %v1544
        %v1553 = vadd.f32 %v1518, %v1544
        %v1554 = vadd.f32 %v1519, %v1544
        %v1555 = vadd.f32 %v1520, %v1544
        %v1556 = vadd.f32 %v1521, %v1544
        %v1557 = vadd.f32 %v1522, %v1544
        %v1558 = vadd.f32 %v1523, %v1544
        %v1559 = vadd.f32 %v1524, %v1544
        %v1560 = vadd.f32 %v1525, %v1544
        %v1561 = vadd.f32 %v1526, %v1544
        %v1562 = vadd.f32 %v1527, %v1544
        %v1563 = vadd.f32 %v1528, %v1544
        %v1564 = vadd.f32 %v1529, %v1544
        %v1565 = vadd.f32 %v1530, %v1544
        %v1566 = vadd.f32 %v1531, %v1544
        %v1567 = vadd.f32 %v1532, %v1544
        %v1568 = vadd.f32 %v1533, %v1544
        %v1569 = vadd.f32 %v1534, %v1544
        %v1570 = vadd.f32 %v1535, %v1544
        %v1571 = vadd.f32 %v1536, %v1544
        %v1572 = vadd.f32 %v1537, %v1544
        %v1573 = vadd.f32 %v1538, %v1544
        %v1574 = vpack.c.bf16 %v1547, %v1546
        %v1575 = vpack.c.bf16 %v1549, %v1548
        %v1576 = vpack.c.bf16 %v1551, %v1550
        %v1577 = vpack.c.bf16 %v1553, %v1552
        %v1578 = vpack.c.bf16 %v1555, %v1554
        %v1579 = vpack.c.bf16 %v1557, %v1556
        %v1580 = vpack.c.bf16 %v1559, %v1558
        %v1581 = vpack.c.bf16 %v1561, %v1560
        %v1582 = vpack.c.bf16 %v1563, %v1562
        %v1583 = vpack.c.bf16 %v1565, %v1564
        %v1584 = vpack.c.bf16 %v1567, %v1566
        %v1585 = vpack.c.bf16 %v1569, %v1568
        %v1586 = vpack.c.bf16 %v1571, %v1570
        %v1587 = vpack.c.bf16 %v1573, %v1572
        %v1588 = vtanh.bf16.pop %v1574
        %v1589 = vtanh.bf16.pop %v1575
        %v1590 = vtanh.bf16.pop %v1576
        %v1591 = vtanh.bf16.pop %v1577
        %v1592 = vtanh.bf16.pop %v1578
        %v1593 = vtanh.bf16.pop %v1579
        %v1594 = vtanh.bf16.pop %v1580
        %v1595 = vtanh.bf16.pop %v1581
        %v1596 = vtanh.bf16.pop %v1582
        %v1597 = vtanh.bf16.pop %v1583
        %v1598 = vtanh.bf16.pop %v1584
        %v1599 = vtanh.bf16.pop %v1585
        %v1600 = vtanh.bf16.pop %v1586
        %v1601 = vtanh.bf16.pop %v1587
        %v1602 = vld [vmem:[#allocation7] sm:$0xff]
        %v1603 = vld [vmem:[#allocation7 + $0x8] sm:$0xff]
        %v1604 = vld [vmem:[#allocation7 + $0x10] sm:$0xff]
        %v1605 = vld [vmem:[#allocation7 + $0x18] sm:$0xff]
        %v1606 = vld [vmem:[#allocation7 + $0x20] sm:$0xff]
        %v1607 = vld [vmem:[#allocation7 + $0x28] sm:$0xff]
        %v1608 = vld [vmem:[#allocation7 + $0x30] sm:$0xff]
        %v1609 = vld [vmem:[#allocation7 + $0x38] sm:$0xff]
        %v1610 = vld [vmem:[#allocation7 + $0x40] sm:$0xff]
        %v1611 = vld [vmem:[#allocation7 + $0x48] sm:$0xff]
        %v1612 = vld [vmem:[#allocation7 + $0x50] sm:$0xff]
        %v1613 = vld [vmem:[#allocation7 + $0x58] sm:$0xff]
        %v1614 = vld [vmem:[#allocation7 + $0x60] sm:$0xff]
        %v1615 = vld [vmem:[#allocation7 + $0x68] sm:$0xff]
        %v1616 = vld [vmem:[#allocation7 + $0x70] sm:$0xff]
        %v1617 = vld [vmem:[#allocation7 + $0x78] sm:$0xff]
        %v1618 = vld [vmem:[#allocation7 + $0x80] sm:$0xff]
        %v1619 = vld [vmem:[#allocation7 + $0x88] sm:$0xff]
        %v1620 = vld [vmem:[#allocation7 + $0x90] sm:$0xff]
        %v1621 = vld [vmem:[#allocation7 + $0x98] sm:$0xff]
        %v1622 = vld [vmem:[#allocation7 + $0xa0] sm:$0xff]
        %v1623 = vld [vmem:[#allocation7 + $0xa8] sm:$0xff]
        %v1624 = vld [vmem:[#allocation7 + $0xb0] sm:$0xff]
        %v1625 = vld [vmem:[#allocation7 + $0xb8] sm:$0xff]
        %v1626 = vld [vmem:[#allocation7 + $0xc0] sm:$0xff]
        %v1627 = vld [vmem:[#allocation7 + $0xc8] sm:$0xff]
        %v1628 = vld [vmem:[#allocation7 + $0xd0] sm:$0xff]
        %v1629 = vld [vmem:[#allocation7 + $0xd8] sm:$0xff]
        %v1630 = vld [vmem:[#allocation7 + $0xe0] sm:$0xff]
        %v1631 = vld [vmem:[#allocation7 + $0xe8] sm:$0xff]
        %v1632 = vld [vmem:[#allocation7 + $0xf0] sm:$0xff]
        %v1633 = vld [vmem:[#allocation7 + $0xf8] sm:$0xff]
        %v1666 = vunpack.c.l.b16 %v1602
        %v1667 = vunpack.c.h.b16 %v1602
        %v1668 = vunpack.c.l.b16 %v1603
        %v1669 = vunpack.c.h.b16 %v1603
        %v1670 = vunpack.c.l.b16 %v1604
        %v1671 = vunpack.c.h.b16 %v1604
        %v1672 = vunpack.c.l.b16 %v1605
        %v1673 = vunpack.c.h.b16 %v1605
        %v1674 = vunpack.c.l.b16 %v1606
        %v1675 = vunpack.c.h.b16 %v1606
        %v1676 = vunpack.c.l.b16 %v1607
        %v1677 = vunpack.c.h.b16 %v1607
        %v1678 = vunpack.c.l.b16 %v1608
        %v1679 = vunpack.c.h.b16 %v1608
        %v1680 = vunpack.c.l.b16 %v1609
        %v1681 = vunpack.c.h.b16 %v1609
        %v1682 = vunpack.c.l.b16 %v1610
        %v1683 = vunpack.c.h.b16 %v1610
        %v1684 = vunpack.c.l.b16 %v1611
        %v1685 = vunpack.c.h.b16 %v1611
        %v1686 = vunpack.c.l.b16 %v1612
        %v1687 = vunpack.c.h.b16 %v1612
        %v1688 = vunpack.c.l.b16 %v1613
        %v1689 = vunpack.c.h.b16 %v1613
        %v1690 = vunpack.c.l.b16 %v1614
        %v1691 = vunpack.c.h.b16 %v1614
        %v1692 = vunpack.c.l.b16 %v1615
        %v1693 = vunpack.c.h.b16 %v1615
        %v1694 = vunpack.c.l.b16 %v1616
        %v1695 = vunpack.c.h.b16 %v1616
        %v1696 = vunpack.c.l.b16 %v1617
        %v1697 = vunpack.c.h.b16 %v1617
        %v1698 = vunpack.c.l.b16 %v1618
        %v1699 = vunpack.c.h.b16 %v1618
        %v1700 = vunpack.c.l.b16 %v1619
        %v1701 = vunpack.c.h.b16 %v1619
        %v1702 = vunpack.c.l.b16 %v1620
        %v1703 = vunpack.c.h.b16 %v1620
        %v1704 = vunpack.c.l.b16 %v1621
        %v1705 = vunpack.c.h.b16 %v1621
        %v1706 = vunpack.c.l.b16 %v1622
        %v1707 = vunpack.c.h.b16 %v1622
        %v1708 = vunpack.c.l.b16 %v1623
        %v1709 = vunpack.c.h.b16 %v1623
        %v1710 = vunpack.c.l.b16 %v1624
        %v1711 = vunpack.c.h.b16 %v1624
        %v1712 = vunpack.c.l.b16 %v1625
        %v1713 = vunpack.c.h.b16 %v1625
        %v1714 = vunpack.c.l.b16 %v1626
        %v1715 = vunpack.c.h.b16 %v1626
        %v1716 = vunpack.c.l.b16 %v1627
        %v1717 = vunpack.c.h.b16 %v1627
        %v1718 = vunpack.c.l.b16 %v1628
        %v1719 = vunpack.c.h.b16 %v1628
        %v1720 = vunpack.c.l.b16 %v1629
        %v1721 = vunpack.c.h.b16 %v1629
        %v1722 = vunpack.c.l.b16 %v1630
        %v1723 = vunpack.c.h.b16 %v1630
        %v1724 = vunpack.c.l.b16 %v1631
        %v1725 = vunpack.c.h.b16 %v1631
        %v1726 = vunpack.c.l.b16 %v1632
        %v1727 = vunpack.c.h.b16 %v1632
        %v1728 = vunpack.c.l.b16 %v1633
        %v1729 = vunpack.c.h.b16 %v1633
        %v1730 = vpack.c.b16 %v1668, %v1666
        %v1731 = vpack.c.b16 %v1669, %v1667
        %v1732 = vpack.c.b16 %v1672, %v1670
        %v1733 = vpack.c.b16 %v1673, %v1671
        %v1734 = vpack.c.b16 %v1676, %v1674
        %v1735 = vpack.c.b16 %v1677, %v1675
        %v1736 = vpack.c.b16 %v1680, %v1678
        %v1737 = vpack.c.b16 %v1681, %v1679
        %v1738 = vpack.c.b16 %v1684, %v1682
        %v1739 = vpack.c.b16 %v1685, %v1683
        %v1740 = vpack.c.b16 %v1688, %v1686
        %v1741 = vpack.c.b16 %v1689, %v1687
        %v1742 = vpack.c.b16 %v1692, %v1690
        %v1743 = vpack.c.b16 %v1693, %v1691
        %v1744 = vpack.c.b16 %v1696, %v1694
        %v1745 = vpack.c.b16 %v1697, %v1695
        %v1746 = vpack.c.b16 %v1700, %v1698
        %v1747 = vpack.c.b16 %v1701, %v1699
        %v1748 = vpack.c.b16 %v1704, %v1702
        %v1749 = vpack.c.b16 %v1705, %v1703
        %v1750 = vpack.c.b16 %v1708, %v1706
        %v1751 = vpack.c.b16 %v1709, %v1707
        %v1752 = vpack.c.b16 %v1712, %v1710
        %v1753 = vpack.c.b16 %v1713, %v1711
        %v1754 = vpack.c.b16 %v1716, %v1714
        %v1755 = vpack.c.b16 %v1717, %v1715
        %v1756 = vpack.c.b16 %v1720, %v1718
        %v1757 = vpack.c.b16 %v1721, %v1719
        %v1758 = vpack.c.b16 %v1724, %v1722
        %v1759 = vpack.c.b16 %v1725, %v1723
        %v1760 = vpack.c.b16 %v1728, %v1726
        %v1761 = vpack.c.b16 %v1729, %v1727
        %1794 = vmatprep.subr.bf16.mxu0 %v1731
        %1795 = vmatpush1.bf16.msra.mxu0 %v1730
        %1796 = vmatprep.subr.bf16.mxu0 %v1733
        %1797 = vmatpush1.bf16.msra.mxu0 %v1732
        %1798 = vmatprep.subr.bf16.mxu0 %v1735
        %1799 = vmatpush1.bf16.msra.mxu0 %v1734
        %1800 = vmatprep.subr.bf16.mxu0 %v1737
        %1801 = vmatpush1.bf16.msra.mxu0 %v1736
        %1802 = vmatprep.subr.bf16.mxu0 %v1739
        %1803 = vmatpush1.bf16.msra.mxu0 %v1738
        %1804 = vmatprep.subr.bf16.mxu0 %v1741
        %1805 = vmatpush1.bf16.msra.mxu0 %v1740
        %1806 = vmatprep.subr.bf16.mxu0 %v1743
        %1807 = vmatpush1.bf16.msra.mxu0 %v1742
        %1808 = vmatprep.subr.bf16.mxu0 %v1745
        %1809 = vmatpush1.bf16.msra.mxu0 %v1744
        %1810 = vmatprep.subr.bf16.mxu0 %v1747
        %1811 = vmatpush1.bf16.msra.mxu0 %v1746
        %1812 = vmatprep.subr.bf16.mxu0 %v1749
        %1813 = vmatpush1.bf16.msra.mxu0 %v1748
        %1814 = vmatprep.subr.bf16.mxu0 %v1751
        %1815 = vmatpush1.bf16.msra.mxu0 %v1750
        %1816 = vmatprep.subr.bf16.mxu0 %v1753
        %1817 = vmatpush1.bf16.msra.mxu0 %v1752
        %1818 = vmatprep.subr.bf16.mxu0 %v1755
        %1819 = vmatpush1.bf16.msra.mxu0 %v1754
        %1820 = vmatprep.subr.bf16.mxu0 %v1757
        %1821 = vmatpush1.bf16.msra.mxu0 %v1756
        %1822 = vmatprep.subr.bf16.mxu0 %v1759
        %1823 = vmatpush1.bf16.msra.mxu0 %v1758
        %1824 = vmatprep.subr.bf16.mxu0 %v1761
        %1825 = vmatpush1.bf16.msra.mxu0 %v1760
        %1826 = vmatprep.mubr.bf16.mxu0 %v1589
        %1827 = vmatmul.mubr.bf16.gmra.mrb[0].mxu0 %v1588
        %v1828 = vpop.f32.mrb[0].mxu0
        %v1829 = vadd.f32 0.0, %v1828
        %v1830 = vpop.f32.mrb[0].mxu0
        %v1831 = vadd.f32 0.0, %v1830
        %v1832 = vpop.f32.mrb[0].mxu0
        %v1833 = vadd.f32 0.0, %v1832
        %v1834 = vpop.f32.mrb[0].mxu0
        %v1835 = vadd.f32 0.0, %v1834
        %1836 = vmatprep.mubr.bf16.mxu0 %v1590
        %1837 = vmatmul.mubr.bf16.gmra.mrb[0].mxu0 %v1589
        %v1838 = vpop.f32.mrb[0].mxu0
        %v1839 = vadd.f32 0.0, %v1838
        %v1840 = vpop.f32.mrb[0].mxu0
        %v1841 = vadd.f32 0.0, %v1840
        %v1842 = vpop.f32.mrb[0].mxu0
        %v1843 = vadd.f32 0.0, %v1842
        %v1844 = vpop.f32.mrb[0].mxu0
        %v1845 = vadd.f32 0.0, %v1844
        %1846 = vmatprep.mubr.bf16.mxu0 %v1591
        %1847 = vmatmul.mubr.bf16.gmra.mrb[0].mxu0 %v1590
        %v1848 = vpop.f32.mrb[0].mxu0
        %v1849 = vadd.f32 0.0, %v1848
        %v1850 = vpop.f32.mrb[0].mxu0
        %v1851 = vadd.f32 0.0, %v1850
        %v1852 = vpop.f32.mrb[0].mxu0
        %v1853 = vadd.f32 0.0, %v1852
        %v1854 = vpop.f32.mrb[0].mxu0
        %v1855 = vadd.f32 0.0, %v1854
        %1856 = vmatprep.mubr.bf16.mxu0 %v1592
        %1857 = vmatmul.mubr.bf16.gmra.mrb[0].mxu0 %v1591
        %v1858 = vpop.f32.mrb[0].mxu0
        %v1859 = vadd.f32 0.0, %v1858
        %v1860 = vpop.f32.mrb[0].mxu0
        %v1861 = vadd.f32 0.0, %v1860
        %v1862 = vpop.f32.mrb[0].mxu0
        %v1863 = vadd.f32 0.0, %v1862
        %v1864 = vpop.f32.mrb[0].mxu0
        %v1865 = vadd.f32 0.0, %v1864
        %1866 = vmatprep.mubr.bf16.mxu0 %v1593
        %1867 = vmatmul.mubr.bf16.gmra.mrb[0].mxu0 %v1592
        %v1868 = vpop.f32.mrb[0].mxu0
        %v1869 = vadd.f32 0.0, %v1868
        %v1870 = vpop.f32.mrb[0].mxu0
        %v1871 = vadd.f32 0.0, %v1870
        %v1872 = vpop.f32.mrb[0].mxu0
        %v1873 = vadd.f32 0.0, %v1872
        %v1874 = vpop.f32.mrb[0].mxu0
        %v1875 = vadd.f32 0.0, %v1874
        %1876 = vmatprep.mubr.bf16.mxu0 %v1594
        %1877 = vmatmul.mubr.bf16.gmra.mrb[0].mxu0 %v1593
        %v1878 = vpop.f32.mrb[0].mxu0
        %v1879 = vadd.f32 0.0, %v1878
        %v1880 = vpop.f32.mrb[0].mxu0
        %v1881 = vadd.f32 0.0, %v1880
        %v1882 = vpop.f32.mrb[0].mxu0
        %v1883 = vadd.f32 0.0, %v1882
        %v1884 = vpop.f32.mrb[0].mxu0
        %v1885 = vadd.f32 0.0, %v1884
        %1886 = vmatprep.mubr.bf16.mxu0 %v1595
        %1887 = vmatmul.mubr.bf16.gmra.mrb[0].mxu0 %v1594
        %v1888 = vpop.f32.mrb[0].mxu0
        %v1889 = vadd.f32 0.0, %v1888
        %v1890 = vpop.f32.mrb[0].mxu0
        %v1891 = vadd.f32 0.0, %v1890
        %v1892 = vpop.f32.mrb[0].mxu0
        %v1893 = vadd.f32 0.0, %v1892
        %v1894 = vpop.f32.mrb[0].mxu0
        %v1895 = vadd.f32 0.0, %v1894
        %1896 = vmatprep.mubr.bf16.mxu0 %v1596
        %1897 = vmatmul.mubr.bf16.gmra.mrb[0].mxu0 %v1595
        %v1898 = vpop.f32.mrb[0].mxu0
        %v1899 = vadd.f32 0.0, %v1898
        %v1900 = vpop.f32.mrb[0].mxu0
        %v1901 = vadd.f32 0.0, %v1900
        %v1902 = vpop.f32.mrb[0].mxu0
        %v1903 = vadd.f32 0.0, %v1902
        %v1904 = vpop.f32.mrb[0].mxu0
        %v1905 = vadd.f32 0.0, %v1904
        %1906 = vmatprep.mubr.bf16.mxu0 %v1597
        %1907 = vmatmul.mubr.bf16.gmra.mrb[0].mxu0 %v1596
        %v1908 = vpop.f32.mrb[0].mxu0
        %v1909 = vadd.f32 0.0, %v1908
        %v1910 = vpop.f32.mrb[0].mxu0
        %v1911 = vadd.f32 0.0, %v1910
        %v1912 = vpop.f32.mrb[0].mxu0
        %v1913 = vadd.f32 0.0, %v1912
        %v1914 = vpop.f32.mrb[0].mxu0
        %v1915 = vadd.f32 0.0, %v1914
        %1916 = vmatprep.mubr.bf16.mxu0 %v1598
        %1917 = vmatmul.mubr.bf16.gmra.mrb[0].mxu0 %v1597
        %v1918 = vpop.f32.mrb[0].mxu0
        %v1919 = vadd.f32 0.0, %v1918
        %v1920 = vpop.f32.mrb[0].mxu0
        %v1921 = vadd.f32 0.0, %v1920
        %v1922 = vpop.f32.mrb[0].mxu0
        %v1923 = vadd.f32 0.0, %v1922
        %v1924 = vpop.f32.mrb[0].mxu0
        %v1925 = vadd.f32 0.0, %v1924
        %1926 = vmatprep.mubr.bf16.mxu0 %v1599
        %1927 = vmatmul.mubr.bf16.gmra.mrb[0].mxu0 %v1598
        %v1928 = vpop.f32.mrb[0].mxu0
        %v1929 = vadd.f32 0.0, %v1928
        %v1930 = vpop.f32.mrb[0].mxu0
        %v1931 = vadd.f32 0.0, %v1930
        %v1932 = vpop.f32.mrb[0].mxu0
        %v1933 = vadd.f32 0.0, %v1932
        %v1934 = vpop.f32.mrb[0].mxu0
        %v1935 = vadd.f32 0.0, %v1934
        %1936 = vmatprep.mubr.bf16.mxu0 %v1600
        %1937 = vmatmul.mubr.bf16.gmra.mrb[0].mxu0 %v1599
        %v1938 = vpop.f32.mrb[0].mxu0
        %v1939 = vadd.f32 0.0, %v1938
        %v1940 = vpop.f32.mrb[0].mxu0
        %v1941 = vadd.f32 0.0, %v1940
        %v1942 = vpop.f32.mrb[0].mxu0
        %v1943 = vadd.f32 0.0, %v1942
        %v1944 = vpop.f32.mrb[0].mxu0
        %v1945 = vadd.f32 0.0, %v1944
        %1946 = vmatprep.mubr.bf16.mxu0 %v1601
        %1947 = vmatmul.mubr.bf16.gmra.mrb[0].mxu0 %v1600
        %v1948 = vpop.f32.mrb[0].mxu0
        %v1949 = vadd.f32 0.0, %v1948
        %v1950 = vpop.f32.mrb[0].mxu0
        %v1951 = vadd.f32 0.0, %v1950
        %v1952 = vpop.f32.mrb[0].mxu0
        %v1953 = vadd.f32 0.0, %v1952
        %v1954 = vpop.f32.mrb[0].mxu0
        %v1955 = vadd.f32 0.0, %v1954
        %1956 = vdwg.mxu0
        %v1957 = vrot.slane %v1831, 1
        %v1958 = vrot.slane %v1835, 1
        %v1959 = vrot.slane %v1841, 1
        %v1960 = vrot.slane %v1845, 1
        %v1961 = vrot.slane %v1851, 1
        %v1962 = vrot.slane %v1855, 1
        %v1963 = vrot.slane %v1861, 1
        %v1964 = vrot.slane %v1865, 1
        %v1965 = vrot.slane %v1871, 1
        %v1966 = vrot.slane %v1875, 1
        %v1967 = vrot.slane %v1881, 1
        %v1968 = vrot.slane %v1885, 1
        %v1969 = vrot.slane %v1891, 1
        %v1970 = vrot.slane %v1895, 1
        %v1971 = vrot.slane %v1901, 1
        %v1972 = vrot.slane %v1905, 1
        %v1973 = vrot.slane %v1911, 1
        %v1974 = vrot.slane %v1915, 1
        %v1975 = vrot.slane %v1921, 1
        %v1976 = vrot.slane %v1925, 1
        %v1977 = vrot.slane %v1931, 1
        %v1978 = vrot.slane %v1935, 1
        %v1979 = vrot.slane %v1941, 1
        %v1980 = vrot.slane %v1945, 1
        %v1981 = vrot.slane %v1951, 1
        %v1982 = vrot.slane %v1955, 1
        %v1983 = vsel %vm962, %v1981, %v1982
        %v1984 = vsel %vm962, %v1980, %v1981
        %v1985 = vsel %vm962, %v1979, %v1980
        %v1986 = vsel %vm962, %v1978, %v1979
        %v1987 = vsel %vm962, %v1977, %v1978
        %v1988 = vsel %vm962, %v1976, %v1977
        %v1989 = vsel %vm962, %v1975, %v1976
        %v1990 = vsel %vm962, %v1974, %v1975
        %v1991 = vsel %vm962, %v1973, %v1974
        %v1992 = vsel %vm962, %v1972, %v1973
        %v1993 = vsel %vm962, %v1971, %v1972
        %v1994 = vsel %vm962, %v1970, %v1971
        %v1995 = vsel %vm962, %v1969, %v1970
        %v1996 = vsel %vm962, %v1968, %v1969
        %v1997 = vsel %vm962, %v1967, %v1968
        %v1998 = vsel %vm962, %v1966, %v1967
        %v1999 = vsel %vm962, %v1965, %v1966
        %v2000 = vsel %vm962, %v1964, %v1965
        %v2001 = vsel %vm962, %v1963, %v1964
        %v2002 = vsel %vm962, %v1962, %v1963
        %v2003 = vsel %vm962, %v1961, %v1962
        %v2004 = vsel %vm962, %v1960, %v1961
        %v2005 = vsel %vm962, %v1959, %v1960
        %v2006 = vsel %vm962, %v1958, %v1959
        %v2007 = vsel %vm962, %v1957, %v1958
        %v2008 = vsel %vm962, %v1982, %v1957
        %v2009 = vadd.f32 %v1829, %v2007
        %v2010 = vadd.f32 %v1833, %v2006
        %v2011 = vadd.f32 %v1839, %v2005
        %v2012 = vadd.f32 %v1843, %v2004
        %v2013 = vadd.f32 %v1849, %v2003
        %v2014 = vadd.f32 %v1853, %v2002
        %v2015 = vadd.f32 %v1859, %v2001
        %v2016 = vadd.f32 %v1863, %v2000
        %v2017 = vadd.f32 %v1869, %v1999
        %v2018 = vadd.f32 %v1873, %v1998
        %v2019 = vadd.f32 %v1879, %v1997
        %v2020 = vadd.f32 %v1883, %v1996
        %v2021 = vadd.f32 %v1889, %v1995
        %v2022 = vadd.f32 %v1893, %v1994
        %v2023 = vadd.f32 %v1899, %v1993
        %v2024 = vadd.f32 %v1903, %v1992
        %v2025 = vadd.f32 %v1909, %v1991
        %v2026 = vadd.f32 %v1913, %v1990
        %v2027 = vadd.f32 %v1919, %v1989
        %v2028 = vadd.f32 %v1923, %v1988
        %v2029 = vadd.f32 %v1929, %v1987
        %v2030 = vadd.f32 %v1933, %v1986
        %v2031 = vadd.f32 %v1939, %v1985
        %v2032 = vadd.f32 %v1943, %v1984
        %v2033 = vadd.f32 %v1949, %v1983
        %v2034 = vadd.f32 %v1953, %v2008
        %v2035 = vld [vmem:[%s6] sm:$0x1]
        %v2037 = vlaneseq
        %v2038 = vshrl.u32 %v2037, 7
        %v2039 = vsub.s32 0, %v2038
        %v2040 = vrot.slane %v2035, %v2039
        %v2042 = vadd.f32 %v2009, %v2040
        %v2043 = vadd.f32 %v2010, %v2040
        %v2044 = vadd.f32 %v2011, %v2040
        %v2045 = vadd.f32 %v2012, %v2040
        %v2046 = vadd.f32 %v2013, %v2040
        %v2047 = vadd.f32 %v2014, %v2040
        %v2048 = vadd.f32 %v2015, %v2040
        %v2049 = vadd.f32 %v2016, %v2040
        %v2050 = vadd.f32 %v2017, %v2040
        %v2051 = vadd.f32 %v2018, %v2040
        %v2052 = vadd.f32 %v2019, %v2040
        %v2053 = vadd.f32 %v2020, %v2040
        %v2054 = vadd.f32 %v2021, %v2040
        %v2055 = vadd.f32 %v2022, %v2040
        %v2056 = vadd.f32 %v2023, %v2040
        %v2057 = vadd.f32 %v2024, %v2040
        %v2058 = vadd.f32 %v2025, %v2040
        %v2059 = vadd.f32 %v2026, %v2040
        %v2060 = vadd.f32 %v2027, %v2040
        %v2061 = vadd.f32 %v2028, %v2040
        %v2062 = vadd.f32 %v2029, %v2040
        %v2063 = vadd.f32 %v2030, %v2040
        %v2064 = vadd.f32 %v2031, %v2040
        %v2065 = vadd.f32 %v2032, %v2040
        %v2066 = vadd.f32 %v2033, %v2040
        %v2067 = vadd.f32 %v2034, %v2040
        %v2068 = vpack.c.bf16 %v2043, %v2042
        %v2069 = vpack.c.bf16 %v2045, %v2044
        %v2070 = vpack.c.bf16 %v2047, %v2046
        %v2071 = vpack.c.bf16 %v2049, %v2048
        %v2072 = vpack.c.bf16 %v2051, %v2050
        %v2073 = vpack.c.bf16 %v2053, %v2052
        %v2074 = vpack.c.bf16 %v2055, %v2054
        %v2075 = vpack.c.bf16 %v2057, %v2056
        %v2076 = vpack.c.bf16 %v2059, %v2058
        %v2077 = vpack.c.bf16 %v2061, %v2060
        %v2078 = vpack.c.bf16 %v2063, %v2062
        %v2079 = vpack.c.bf16 %v2065, %v2064
        %v2080 = vpack.c.bf16 %v2067, %v2066
        %v2081 = vtanh.bf16.pop %v2068
        %v2082 = vtanh.bf16.pop %v2069
        %v2083 = vtanh.bf16.pop %v2070
        %v2084 = vtanh.bf16.pop %v2071
        %v2085 = vtanh.bf16.pop %v2072
        %v2086 = vtanh.bf16.pop %v2073
        %v2087 = vtanh.bf16.pop %v2074
        %v2088 = vtanh.bf16.pop %v2075
        %v2089 = vtanh.bf16.pop %v2076
        %v2090 = vtanh.bf16.pop %v2077
        %v2091 = vtanh.bf16.pop %v2078
        %v2092 = vtanh.bf16.pop %v2079
        %v2093 = vtanh.bf16.pop %v2080
        %v2094 = vld [vmem:[%s7] sm:$0xf]
        %v2095 = vld [vmem:[%s7 + $0x4] sm:$0xf]
        %v2096 = vld [vmem:[%s7 + $0x8] sm:$0xf]
        %v2097 = vld [vmem:[%s7 + $0xc] sm:$0xf]
        %v2098 = vld [vmem:[%s7 + $0x10] sm:$0xf]
        %v2099 = vld [vmem:[%s7 + $0x14] sm:$0xf]
        %v2100 = vld [vmem:[%s7 + $0x18] sm:$0xf]
        %v2101 = vld [vmem:[%s7 + $0x1c] sm:$0xf]
        %v2102 = vld [vmem:[%s7 + $0x20] sm:$0xf]
        %v2103 = vld [vmem:[%s7 + $0x24] sm:$0xf]
        %v2104 = vld [vmem:[%s7 + $0x28] sm:$0xf]
        %v2105 = vld [vmem:[%s7 + $0x2c] sm:$0xf]
        %v2106 = vld [vmem:[%s7 + $0x30] sm:$0xf]
        %v2107 = vld [vmem:[%s7 + $0x34] sm:$0xf]
        %v2108 = vld [vmem:[%s7 + $0x38] sm:$0xf]
        %v2109 = vld [vmem:[%s7 + $0x3c] sm:$0xf]
        %v2110 = vld [vmem:[%s8] sm:$0x1]
        %v2112 = vlaneseq
        %v2113 = vshrl.u32 %v2112, 7
        %v2114 = vsub.s32 0, %v2113
        %v2115 = vrot.slane %v2110, %v2114
        %v2133 = vunpack.c.l.b16 %v2094
        %v2134 = vunpack.c.l.b16 %v2095
        %v2135 = vunpack.c.l.b16 %v2096
        %v2136 = vunpack.c.l.b16 %v2097
        %v2137 = vunpack.c.l.b16 %v2098
        %v2138 = vunpack.c.l.b16 %v2099
        %v2139 = vunpack.c.l.b16 %v2100
        %v2140 = vunpack.c.l.b16 %v2101
        %v2141 = vunpack.c.l.b16 %v2102
        %v2142 = vunpack.c.l.b16 %v2103
        %v2143 = vunpack.c.l.b16 %v2104
        %v2144 = vunpack.c.l.b16 %v2105
        %v2145 = vunpack.c.l.b16 %v2106
        %v2146 = vunpack.c.l.b16 %v2107
        %v2147 = vunpack.c.l.b16 %v2108
        %v2148 = vunpack.c.l.b16 %v2109
        %v2149 = vpack.c.b16 %v2134, %v2133
        %v2150 = vpack.c.b16 %v2136, %v2135
        %v2151 = vpack.c.b16 %v2138, %v2137
        %v2152 = vpack.c.b16 %v2140, %v2139
        %v2153 = vpack.c.b16 %v2142, %v2141
        %v2154 = vpack.c.b16 %v2144, %v2143
        %v2155 = vpack.c.b16 %v2146, %v2145
        %v2156 = vpack.c.b16 %v2148, %v2147
        %2165 = vmatprep.subr.bf16.mxu0 0
        %2166 = vmatpush1.bf16.msra.mxu0 %v2149
        %2167 = vmatprep.subr.bf16.mxu0 0
        %2168 = vmatpush1.bf16.msra.mxu0 %v2150
        %2169 = vmatprep.subr.bf16.mxu0 0
        %2170 = vmatpush1.bf16.msra.mxu0 %v2151
        %2171 = vmatprep.subr.bf16.mxu0 0
        %2172 = vmatpush1.bf16.msra.mxu0 %v2152
        %2173 = vmatprep.subr.bf16.mxu0 0
        %2174 = vmatpush1.bf16.msra.mxu0 %v2153
        %2175 = vmatprep.subr.bf16.mxu0 0
        %2176 = vmatpush1.bf16.msra.mxu0 %v2154
        %2177 = vmatprep.subr.bf16.mxu0 0
        %2178 = vmatpush1.bf16.msra.mxu0 %v2155
        %2179 = vmatprep.subr.bf16.mxu0 0
        %2180 = vmatpush1.bf16.msra.mxu0 %v2156
        %2181 = vmatprep.subr.bf16.mxu0 0
        %2182 = vmatpush1.bf16.msra.mxu0 0
        %2183 = vmatprep.subr.bf16.mxu0 0
        %2184 = vmatpush1.bf16.msra.mxu0 0
        %2185 = vmatprep.subr.bf16.mxu0 0
        %2186 = vmatpush1.bf16.msra.mxu0 0
        %2187 = vmatprep.subr.bf16.mxu0 0
        %2188 = vmatpush1.bf16.msra.mxu0 0
        %2189 = vmatprep.subr.bf16.mxu0 0
        %2190 = vmatpush1.bf16.msra.mxu0 0
        %2191 = vmatprep.subr.bf16.mxu0 0
        %2192 = vmatpush1.bf16.msra.mxu0 0
        %2193 = vmatprep.subr.bf16.mxu0 0
        %2194 = vmatpush1.bf16.msra.mxu0 0
        %2195 = vmatprep.subr.bf16.mxu0 0
        %2196 = vmatpush1.bf16.msra.mxu0 0
        %2197 = vmatprep.mubr.bf16.mxu0 0
        %2198 = vmatmul.mubr.bf16.gmra.mrb[0].mxu0 %v2081
        %v2199 = vpop.f32.mrb[0].mxu0
        %v2200 = vadd.f32 %v2115, %v2199
        %v2201 = vpop.f32.mrb[0].mxu0
        %v2202 = vpop.f32.mrb[0].mxu0
        %v2203 = vadd.f32 %v2115, %v2202
        %v2204 = vpop.f32.mrb[0].mxu0
        %2205 = vmatprep.mubr.bf16.mxu0 0
        %2206 = vmatmul.mubr.bf16.gmra.mrb[0].mxu0 %v2082
        %v2207 = vpop.f32.mrb[0].mxu0
        %v2208 = vadd.f32 %v2115, %v2207
        %v2209 = vpop.f32.mrb[0].mxu0
        %v2210 = vpop.f32.mrb[0].mxu0
        %v2211 = vadd.f32 %v2115, %v2210
        %v2212 = vpop.f32.mrb[0].mxu0
        %2213 = vmatprep.mubr.bf16.mxu0 0
        %2214 = vmatmul.mubr.bf16.gmra.mrb[0].mxu0 %v2083
        %v2215 = vpop.f32.mrb[0].mxu0
        %v2216 = vadd.f32 %v2115, %v2215
        %v2217 = vpop.f32.mrb[0].mxu0
        %v2218 = vpop.f32.mrb[0].mxu0
        %v2219 = vadd.f32 %v2115, %v2218
        %v2220 = vpop.f32.mrb[0].mxu0
        %2221 = vmatprep.mubr.bf16.mxu0 0
        %2222 = vmatmul.mubr.bf16.gmra.mrb[0].mxu0 %v2084
        %v2223 = vpop.f32.mrb[0].mxu0
        %v2224 = vadd.f32 %v2115, %v2223
        %v2225 = vpop.f32.mrb[0].mxu0
        %v2226 = vpop.f32.mrb[0].mxu0
        %v2227 = vadd.f32 %v2115, %v2226
        %v2228 = vpop.f32.mrb[0].mxu0
        %2229 = vmatprep.mubr.bf16.mxu0 0
        %2230 = vmatmul.mubr.bf16.gmra.mrb[0].mxu0 %v2085
        %v2231 = vpop.f32.mrb[0].mxu0
        %v2232 = vadd.f32 %v2115, %v2231
        %v2233 = vpop.f32.mrb[0].mxu0
        %v2234 = vpop.f32.mrb[0].mxu0
        %v2235 = vadd.f32 %v2115, %v2234
        %v2236 = vpop.f32.mrb[0].mxu0
        %2237 = vmatprep.mubr.bf16.mxu0 0
        %2238 = vmatmul.mubr.bf16.gmra.mrb[0].mxu0 %v2086
        %v2239 = vpop.f32.mrb[0].mxu0
        %v2240 = vadd.f32 %v2115, %v2239
        %v2241 = vpop.f32.mrb[0].mxu0
        %v2242 = vpop.f32.mrb[0].mxu0
        %v2243 = vadd.f32 %v2115, %v2242
        %v2244 = vpop.f32.mrb[0].mxu0
        %2245 = vmatprep.mubr.bf16.mxu0 0
        %2246 = vmatmul.mubr.bf16.gmra.mrb[0].mxu0 %v2087
        %v2247 = vpop.f32.mrb[0].mxu0
        %v2248 = vadd.f32 %v2115, %v2247
        %v2249 = vpop.f32.mrb[0].mxu0
        %v2250 = vpop.f32.mrb[0].mxu0
        %v2251 = vadd.f32 %v2115, %v2250
        %v2252 = vpop.f32.mrb[0].mxu0
        %2253 = vmatprep.mubr.bf16.mxu0 0
        %2254 = vmatmul.mubr.bf16.gmra.mrb[0].mxu0 %v2088
        %v2255 = vpop.f32.mrb[0].mxu0
        %v2256 = vadd.f32 %v2115, %v2255
        %v2257 = vpop.f32.mrb[0].mxu0
        %v2258 = vpop.f32.mrb[0].mxu0
        %v2259 = vadd.f32 %v2115, %v2258
        %v2260 = vpop.f32.mrb[0].mxu0
        %2261 = vmatprep.mubr.bf16.mxu0 0
        %2262 = vmatmul.mubr.bf16.gmra.mrb[0].mxu0 %v2089
        %v2263 = vpop.f32.mrb[0].mxu0
        %v2264 = vadd.f32 %v2115, %v2263
        %v2265 = vpop.f32.mrb[0].mxu0
        %v2266 = vpop.f32.mrb[0].mxu0
        %v2267 = vadd.f32 %v2115, %v2266
        %v2268 = vpop.f32.mrb[0].mxu0
        %2269 = vmatprep.mubr.bf16.mxu0 0
        %2270 = vmatmul.mubr.bf16.gmra.mrb[0].mxu0 %v2090
        %v2271 = vpop.f32.mrb[0].mxu0
        %v2272 = vadd.f32 %v2115, %v2271
        %v2273 = vpop.f32.mrb[0].mxu0
        %v2274 = vpop.f32.mrb[0].mxu0
        %v2275 = vadd.f32 %v2115, %v2274
        %v2276 = vpop.f32.mrb[0].mxu0
        %2277 = vmatprep.mubr.bf16.mxu0 0
        %2278 = vmatmul.mubr.bf16.gmra.mrb[0].mxu0 %v2091
        %v2279 = vpop.f32.mrb[0].mxu0
        %v2280 = vadd.f32 %v2115, %v2279
        %v2281 = vpop.f32.mrb[0].mxu0
        %v2282 = vpop.f32.mrb[0].mxu0
        %v2283 = vadd.f32 %v2115, %v2282
        %v2284 = vpop.f32.mrb[0].mxu0
        %2285 = vmatprep.mubr.bf16.mxu0 0
        %2286 = vmatmul.mubr.bf16.gmra.mrb[0].mxu0 %v2092
        %v2287 = vpop.f32.mrb[0].mxu0
        %v2288 = vadd.f32 %v2115, %v2287
        %v2289 = vpop.f32.mrb[0].mxu0
        %v2290 = vpop.f32.mrb[0].mxu0
        %v2291 = vadd.f32 %v2115, %v2290
        %v2292 = vpop.f32.mrb[0].mxu0
        %2293 = vmatprep.mubr.bf16.mxu0 0
        %2294 = vmatmul.mubr.bf16.gmra.mrb[0].mxu0 %v2093
        %v2295 = vpop.f32.mrb[0].mxu0
        %v2296 = vadd.f32 %v2115, %v2295
        %v2297 = vpop.f32.mrb[0].mxu0
        %v2298 = vpop.f32.mrb[0].mxu0
        %v2299 = vadd.f32 %v2115, %v2298
        %v2300 = vpop.f32.mrb[0].mxu0
        %2301 = vdwg.mxu0
        %v2302 = vtanh.pop %v2200
        %v2303 = vtanh.pop %v2203
        %v2304 = vtanh.pop %v2208
        %v2305 = vtanh.pop %v2211
        %v2306 = vtanh.pop %v2216
        %v2307 = vtanh.pop %v2219
        %v2308 = vtanh.pop %v2224
        %v2309 = vtanh.pop %v2227
        %v2310 = vtanh.pop %v2232
        %v2311 = vtanh.pop %v2235
        %v2312 = vtanh.pop %v2240
        %v2313 = vtanh.pop %v2243
        %v2314 = vtanh.pop %v2248
        %v2315 = vtanh.pop %v2251
        %v2316 = vtanh.pop %v2256
        %v2317 = vtanh.pop %v2259
        %v2318 = vtanh.pop %v2264
        %v2319 = vtanh.pop %v2267
        %v2320 = vtanh.pop %v2272
        %v2321 = vtanh.pop %v2275
        %v2322 = vtanh.pop %v2280
        %v2323 = vtanh.pop %v2283
        %v2324 = vtanh.pop %v2288
        %v2325 = vtanh.pop %v2291
        %v2326 = vtanh.pop %v2296
        %v2327 = vtanh.pop %v2299
        %v2328 = vpack.c.bf16 %v2303, %v2302
        %v2329 = vpack.c.bf16 %v2305, %v2304
        %v2330 = vpack.c.bf16 %v2307, %v2306
        %v2331 = vpack.c.bf16 %v2309, %v2308
        %v2332 = vpack.c.bf16 %v2311, %v2310
        %v2333 = vpack.c.bf16 %v2313, %v2312
        %v2334 = vpack.c.bf16 %v2315, %v2314
        %v2335 = vpack.c.bf16 %v2317, %v2316
        %v2336 = vpack.c.bf16 %v2319, %v2318
        %v2337 = vpack.c.bf16 %v2321, %v2320
        %v2338 = vpack.c.bf16 %v2323, %v2322
        %v2339 = vpack.c.bf16 %v2325, %v2324
        %v2340 = vpack.c.bf16 %v2327, %v2326
        %v2354 = vunpack.c.l.b16 %v2328
        %v2355 = vunpack.c.h.b16 %v2328
        %v2356 = vunpack.c.l.b16 %v2329
        %v2357 = vunpack.c.h.b16 %v2329
        %v2358 = vunpack.c.l.b16 %v2330
        %v2359 = vunpack.c.h.b16 %v2330
        %v2360 = vunpack.c.l.b16 %v2331
        %v2361 = vunpack.c.h.b16 %v2331
        %v2362 = vunpack.c.l.b16 %v2332
        %v2363 = vunpack.c.h.b16 %v2332
        %v2364 = vunpack.c.l.b16 %v2333
        %v2365 = vunpack.c.h.b16 %v2333
        %v2366 = vunpack.c.l.b16 %v2334
        %v2367 = vunpack.c.h.b16 %v2334
        %v2368 = vunpack.c.l.b16 %v2335
        %v2369 = vunpack.c.h.b16 %v2335
        %v2370 = vunpack.c.l.b16 %v2336
        %v2371 = vunpack.c.h.b16 %v2336
        %v2372 = vunpack.c.l.b16 %v2337
        %v2373 = vunpack.c.h.b16 %v2337
        %v2374 = vunpack.c.l.b16 %v2338
        %v2375 = vunpack.c.h.b16 %v2338
        %v2376 = vunpack.c.l.b16 %v2339
        %v2377 = vunpack.c.h.b16 %v2339
        %v2378 = vunpack.c.l.b16 %v2340
        %v2379 = vunpack.c.h.b16 %v2340
        %v2380 = vpack.c.b16 %v2354, %v2354
        %v2381 = vpack.c.b16 %v2355, %v2355
        %v2382 = vpack.c.b16 %v2356, %v2356
        %v2383 = vpack.c.b16 %v2357, %v2357
        %v2384 = vpack.c.b16 %v2358, %v2358
        %v2385 = vpack.c.b16 %v2359, %v2359
        %v2386 = vpack.c.b16 %v2360, %v2360
        %v2387 = vpack.c.b16 %v2361, %v2361
        %v2388 = vpack.c.b16 %v2362, %v2362
        %v2389 = vpack.c.b16 %v2363, %v2363
        %v2390 = vpack.c.b16 %v2364, %v2364
        %v2391 = vpack.c.b16 %v2365, %v2365
        %v2392 = vpack.c.b16 %v2366, %v2366
        %v2393 = vpack.c.b16 %v2367, %v2367
        %v2394 = vpack.c.b16 %v2368, %v2368
        %v2395 = vpack.c.b16 %v2369, %v2369
        %v2396 = vpack.c.b16 %v2370, %v2370
        %v2397 = vpack.c.b16 %v2371, %v2371
        %v2398 = vpack.c.b16 %v2372, %v2372
        %v2399 = vpack.c.b16 %v2373, %v2373
        %v2400 = vpack.c.b16 %v2374, %v2374
        %v2401 = vpack.c.b16 %v2375, %v2375
        %v2402 = vpack.c.b16 %v2376, %v2376
        %v2403 = vpack.c.b16 %v2377, %v2377
        %v2404 = vpack.c.b16 %v2378, %v2378
        %v2405 = vpack.c.b16 %v2379, %v2379
        %vm2432 = vcmask 11264
        %2433 = vst.msk [vmem:[%s420] sm:$0xf] %vm2432, %v2380
        %2434 = vst.msk [vmem:[%s420 + $0x4] sm:$0xf] %vm2432, %v2381
        %2435 = vst.msk [vmem:[%s420 + $0x8] sm:$0xf] %vm2432, %v2382
        %2436 = vst.msk [vmem:[%s420 + $0xc] sm:$0xf] %vm2432, %v2383
        %2437 = vst.msk [vmem:[%s420 + $0x10] sm:$0xf] %vm2432, %v2384
        %2438 = vst.msk [vmem:[%s420 + $0x14] sm:$0xf] %vm2432, %v2385
        %2439 = vst.msk [vmem:[%s420 + $0x18] sm:$0xf] %vm2432, %v2386
        %2440 = vst.msk [vmem:[%s420 + $0x1c] sm:$0xf] %vm2432, %v2387
        %2441 = vst.msk [vmem:[%s420 + $0x20] sm:$0xf] %vm2432, %v2388
        %2442 = vst.msk [vmem:[%s420 + $0x24] sm:$0xf] %vm2432, %v2389
        %2443 = vst.msk [vmem:[%s420 + $0x28] sm:$0xf] %vm2432, %v2390
        %2444 = vst.msk [vmem:[%s420 + $0x2c] sm:$0xf] %vm2432, %v2391
        %2445 = vst.msk [vmem:[%s420 + $0x30] sm:$0xf] %vm2432, %v2392
        %2446 = vst.msk [vmem:[%s420 + $0x34] sm:$0xf] %vm2432, %v2393
        %2447 = vst.msk [vmem:[%s420 + $0x38] sm:$0xf] %vm2432, %v2394
        %2448 = vst.msk [vmem:[%s420 + $0x3c] sm:$0xf] %vm2432, %v2395
        %2449 = vst.msk [vmem:[%s420 + $0x40] sm:$0xf] %vm2432, %v2396
        %2450 = vst.msk [vmem:[%s420 + $0x44] sm:$0xf] %vm2432, %v2397
        %2451 = vst.msk [vmem:[%s420 + $0x48] sm:$0xf] %vm2432, %v2398
        %2452 = vst.msk [vmem:[%s420 + $0x4c] sm:$0xf] %vm2432, %v2399
        %2453 = vst.msk [vmem:[%s420 + $0x50] sm:$0xf] %vm2432, %v2400
        %2454 = vst.msk [vmem:[%s420 + $0x54] sm:$0xf] %vm2432, %v2401
        %2455 = vst.msk [vmem:[%s420 + $0x58] sm:$0xf] %vm2432, %v2402
        %2456 = vst.msk [vmem:[%s420 + $0x5c] sm:$0xf] %vm2432, %v2403
        %2457 = vst.msk [vmem:[%s420 + $0x60] sm:$0xf] %vm2432, %v2404
        %2458 = vst.msk [vmem:[%s420 + $0x64] sm:$0xf] %vm2432, %v2405
        %s2459 = smul.u32 13, %s30
        %p2460 = scmp.lt.s32.totalorder %s29, 1
        %s2461 = scalar_select %p2460, %s29, 1
        %p2462 = scmp.lt.s32.totalorder %s2459, 12
        %s2463 = scalar_select %p2462, %s2459, 12
        %s2464 = smul.addr %s2463, 2
        %s2465 = smul.addr %s2461, 26
        %s2466 = sadd.s32 %s2464, %s2465
        %s2467 = smul.addr %s2466, 4
        %s2468 = scalar_lea.vmem %s9, %s2467
        // Predicated region
        $region73: #{tpu_custom_call.1} parent=55 // pred_check
          %p2469 = pneg %p251
        $region74: #{tpu_custom_call.1} parent=55 // pred_check_branch
          %2471 = sbr.rel (%p2469) target = $region76
        $region75: #{tpu_custom_call.1} parent=55 // pred_region
          %s2472 = smul.u32 13, %s30
        $region76: #{tpu_custom_call.1} parent=55 // pred_fallthru
          _
      $region56: #{tpu_custom_call.1} parent=5 // pred_fallthru
        _
      %p2473 = scmp.le.s32.totalorder 2, %s20
      // Predicated region
      $region77: #{tpu_custom_call.1} parent=5 // pred_check
        %p2474 = pneg %p2473
      $region78: #{tpu_custom_call.1} parent=5 // pred_check_branch
        %2476 = sbr.rel (%p2474) target = $region80
      $region79: #{tpu_custom_call.1} parent=5 // pred_region
        %s2477 = ssub.s32 %s20, 2
        // Predicated region
        $region81: #{tpu_custom_call.1} parent=79 // pred_check
          %p2478 = pneg %p257
        $region82: #{tpu_custom_call.1} parent=79 // pred_check_branch
          %2480 = sbr.rel (%p2478) target = $region84
        $region83: #{tpu_custom_call.1} parent=79 // pred_region
          %s2481 = smul.u32 13, %s32
          %p2482 = scmp.lt.s32.totalorder %s31, 1
          %s2483 = scalar_select %p2482, %s31, 1
          %p2484 = scmp.lt.s32.totalorder %s2481, 12
          %s2485 = scalar_select %p2484, %s2481, 12
          %s2486 = smul.addr %s2485, 2
          %s2487 = smul.addr %s2483, 26
          %s2488 = sadd.s32 %s2486, %s2487
          %s2489 = smul.addr %s2488, 4
          %s2490 = scalar_lea.vmem %s9, %s2489
        $region84: #{tpu_custom_call.1} parent=79 // pred_fallthru
          _
      $region80: #{tpu_custom_call.1} parent=5 // pred_fallthru
        _
    $region6: #{tpu_custom_call.1} parent=1 // loop_footer
      %s24 = sadd.s32 1, %s20
    $region7: #{tpu_custom_call.1} parent=1 // loop_footer_branch
      %19 = sbr.rel target = $region3
    $region8: #{tpu_custom_call.1} parent=1 // loop_exit
      _
    %2491 = vsyncpa [#allocation3], 1
    %s2492 = scalar_lea.sflag [#allocation3], 1
    %2493 = vsyncpa %s2492, 1
    %2494 = vsyncpa [#allocation5], 1
    %2495 = vsyncpa [#allocation8], 1

</llo_original>
